<compile_context>
chip_gen: v5e
topology: v5e:2x2
jax: 0.10.0
libtpu: 0.0.40
codegen_flags: <defaults>
</compile_context>

<pallas_src>
import math

import jax
import jax.numpy as jnp
from jax.experimental import pallas as pl
from jax.experimental.pallas import tpu as pltpu

BATCH = 8
SEQ_LEN = 128      # L  (lane-dense score/output tile)
X_SIZE = 32        # h1 (doc hidden)
Y_SIZE = 32        # h2 (question hidden / GRU hidden)
BATCH_TILE = 8


def answer_kernel(x_ref, y_ref, mask_ref, wlin_ref, blin_ref,
                  wir_ref, wiz_ref, win_ref,
                  whr_ref, whz_ref, whn_ref,
                  br_ref, bz_ref, bin_ref, bhn_ref,
                  xwy_ref, ynew_ref):
    x = x_ref[...]         # (TB, L, D1)
    y = y_ref[...]         # (TB, D2)
    mask = mask_ref[...]   # (TB, L), 1.0 where padded

    # yW = y @ W_lin + b_lin   (W_lin stored transposed: (D2, D1))
    yW = jnp.dot(y, wlin_ref[...], preferred_element_type=jnp.float32) + blin_ref[...]

    # Bilinear scores: xWy[b, l] = sum_d yW[b, d] * x[b, l, d]
    scores = jnp.sum(yW[:, None, :] * x, axis=-1)            # (TB, L)
    scores = jnp.where(mask > 0.0, -jnp.inf, scores)         # masked_fill_(-inf)
    xwy_ref[...] = scores

    # Masked softmax over the sequence dimension.
    m = jnp.max(scores, axis=-1, keepdims=True)
    e = jnp.exp(scores - m)                                  # exp(-inf) = 0 on pads
    alpha = e / jnp.sum(e, axis=-1, keepdims=True)           # (TB, L)

    # Attention pooling: rnn_in[b, d] = sum_l alpha[b, l] * x[b, l, d]
    rnn_in = jnp.sum(alpha[:, :, None] * x, axis=1)          # (TB, D1)

    # GRUCell(rnn_in, y) with per-gate weights (no mid-vreg slicing).
    r = jax.nn.sigmoid(
        jnp.dot(rnn_in, wir_ref[...], preferred_element_type=jnp.float32)
        + jnp.dot(y, whr_ref[...], preferred_element_type=jnp.float32)
        + br_ref[...])
    z = jax.nn.sigmoid(
        jnp.dot(rnn_in, wiz_ref[...], preferred_element_type=jnp.float32)
        + jnp.dot(y, whz_ref[...], preferred_element_type=jnp.float32)
        + bz_ref[...])
    n = jnp.tanh(
        jnp.dot(rnn_in, win_ref[...], preferred_element_type=jnp.float32)
        + bin_ref[...]
        + r * (jnp.dot(y, whn_ref[...], preferred_element_type=jnp.float32)
               + bhn_ref[...]))
    # h' = (1 - z) * n + z * h  ==  n + z * (h - n)
    ynew_ref[...] = n + z * (y - n)


def answer_forward(x, y, x_mask, params, *, batch_tile=BATCH_TILE):
    """x: (B, L, D1) f32; y: (B, D2) f32; x_mask: (B, L) bool (True = pad)."""
    B, L, D1 = x.shape
    D2 = y.shape[-1]
    H = D2
    assert B % batch_tile == 0, "batch must be divisible by the batch tile"

    w_lin, b_lin = params["w_lin"], params["b_lin"]
    w_ih, w_hh, b_ih, b_hh = (params["w_ih"], params["w_hh"],
                              params["b_ih"], params["b_hh"])

    # Pre-split GRU projections per gate (r, z, n); torch gate order preserved.
    w_ir, w_iz, w_in = (w_ih[:, i * H:(i + 1) * H] for i in range(3))
    w_hr, w_hz, w_hn = (w_hh[:, i * H:(i + 1) * H] for i in range(3))
    b_r = (b_ih[:H] + b_hh[:H]).reshape(1, H)
    b_z = (b_ih[H:2 * H] + b_hh[H:2 * H]).reshape(1, H)
    b_in = b_ih[2 * H:].reshape(1, H)
    b_hn = b_hh[2 * H:].reshape(1, H)

    mask_f = x_mask.astype(jnp.float32)

    TB = batch_tile
    grid = (B // TB,)
    row = lambda shape: pl.BlockSpec(shape, lambda i, _s=shape: (i,) + (0,) * (len(_s) - 1))
    rep = lambda shape: pl.BlockSpec(shape, lambda i, _s=shape: (0,) * len(_s))

    operands = (x, y, mask_f, w_lin, b_lin, w_ir, w_iz, w_in,
                w_hr, w_hz, w_hn, b_r, b_z, b_in, b_hn)
    bytes_accessed = sum(int(a.size) * 4 for a in operands) + 4 * (B * L + B * D2)
    flops = 2 * B * (D2 * D1 + 2 * L * D1 + 3 * D1 * H + 3 * H * H)
    transcendentals = B * (L + 3 * H)

    xwy, y_new = pl.pallas_call(
        answer_kernel,
        out_shape=(jax.ShapeDtypeStruct((B, L), jnp.float32),
                   jax.ShapeDtypeStruct((B, D2), jnp.float32)),
        grid=grid,
        in_specs=[
            row((TB, L, D1)),                               # x
            row((TB, D2)),                                  # y
            row((TB, L)),                                   # x_mask
            rep((D2, D1)), rep((1, D1)),                    # linear W, b
            rep((D1, H)), rep((D1, H)), rep((D1, H)),       # W_ir, W_iz, W_in
            rep((H, H)), rep((H, H)), rep((H, H)),          # W_hr, W_hz, W_hn
            rep((1, H)), rep((1, H)), rep((1, H)), rep((1, H)),  # b_r, b_z, b_in, b_hn
        ],
        out_specs=(row((TB, L)), row((TB, D2))),
        compiler_params=pltpu.CompilerParams(dimension_semantics=("parallel",)),
        cost_estimate=pl.CostEstimate(flops=flops,
                                      transcendentals=transcendentals,
                                      bytes_accessed=bytes_accessed),
    )(x, y, mask_f, w_lin, b_lin,
      w_ir, w_iz, w_in, w_hr, w_hz, w_hn,
      b_r, b_z, b_in, b_hn)
    return xwy, y_new


def init_params(key, x_size, y_size):
    """Match torch init: xavier_uniform_ linear weight, bias=0.1, GRUCell
    default U(-1/sqrt(hidden), 1/sqrt(hidden)). Weights stored transposed."""
    k1, k2, k3, k4, k5 = jax.random.split(key, 5)
    xav = math.sqrt(6.0 / (x_size + y_size))
    w_lin = jax.random.uniform(k1, (y_size, x_size), minval=-xav, maxval=xav,
                               dtype=jnp.float32)
    b_lin = jnp.full((1, x_size), 0.1, dtype=jnp.float32)

    bound = 1.0 / math.sqrt(y_size)
    w_ih = jax.random.uniform(k2, (x_size, 3 * y_size), minval=-bound,
                              maxval=bound, dtype=jnp.float32)
    w_hh = jax.random.uniform(k3, (y_size, 3 * y_size), minval=-bound,
                              maxval=bound, dtype=jnp.float32)
    b_ih = jax.random.uniform(k4, (3 * y_size,), minval=-bound, maxval=bound,
                              dtype=jnp.float32)
    b_hh = jax.random.uniform(k5, (3 * y_size,), minval=-bound, maxval=bound,
                              dtype=jnp.float32)
    return dict(w_lin=w_lin, b_lin=b_lin, w_ih=w_ih, w_hh=w_hh,
                b_ih=b_ih, b_hh=b_hh)


def answer_reference(x, y, x_mask, params):
    """Pure-JAX reference mirroring the PyTorch forward (eval, first=True)."""
    H = y.shape[-1]
    yW = y @ params["w_lin"] + params["b_lin"]
    xWy = jnp.einsum("bd,bld->bl", yW, x)
    xWy = jnp.where(x_mask, -jnp.inf, xWy)
    alpha = jax.nn.softmax(xWy, axis=-1)
    rnn_in = jnp.einsum("bl,bld->bd", alpha, x)

    gi = rnn_in @ params["w_ih"] + params["b_ih"]
    gh = y @ params["w_hh"] + params["b_hh"]
    r = jax.nn.sigmoid(gi[:, :H] + gh[:, :H])
    z = jax.nn.sigmoid(gi[:, H:2 * H] + gh[:, H:2 * H])
    n = jnp.tanh(gi[:, 2 * H:] + r * gh[:, 2 * H:])
    y_new = (1.0 - z) * n + z * y
    return xWy, y_new


if __name__ == "__main__":
    key = jax.random.PRNGKey(0)
    k_x, k_y, k_p = jax.random.split(key, 3)

    x = jax.random.normal(k_x, (BATCH, SEQ_LEN, X_SIZE), dtype=jnp.float32)
    y = jax.random.normal(k_y, (BATCH, Y_SIZE), dtype=jnp.float32)

    # Per-row sequence lengths (each row has at least one valid position).
    lengths = jnp.array([SEQ_LEN, SEQ_LEN - 3, SEQ_LEN // 2, SEQ_LEN - 1,
                         5, SEQ_LEN, SEQ_LEN - 17, 23], dtype=jnp.int32)
    x_mask = jnp.arange(SEQ_LEN)[None, :] >= lengths[:, None]   # True = padded

    params = init_params(k_p, X_SIZE, Y_SIZE)

    xwy, y_new = answer_forward(x, y, x_mask, params)
    xwy, y_new = jax.block_until_ready((xwy, y_new))

    xwy_ref, y_new_ref = answer_reference(x, y, x_mask, params)
    assert xwy.shape == (BATCH, SEQ_LEN) and y_new.shape == (BATCH, Y_SIZE)
    assert jnp.allclose(xwy, xwy_ref, atol=1e-4, rtol=1e-4), "xWy mismatch"
    assert jnp.allclose(y_new, y_new_ref, atol=1e-4, rtol=1e-4), "y_new mismatch"
    print("KERNEL_OK")
</pallas_src>

<mosaic_0001>
module attributes {stable_mosaic.version = 11 : i64} {
  func.func @answer_kernel(%arg0: i32, %arg1: memref<8x128x32xf32, #tpu.memory_space<vmem>>, %arg2: memref<8x32xf32, #tpu.memory_space<vmem>>, %arg3: memref<8x128xf32, #tpu.memory_space<vmem>>, %arg4: memref<32x32xf32, #tpu.memory_space<vmem>>, %arg5: memref<1x32xf32, #tpu.memory_space<vmem>>, %arg6: memref<32x32xf32, #tpu.memory_space<vmem>>, %arg7: memref<32x32xf32, #tpu.memory_space<vmem>>, %arg8: memref<32x32xf32, #tpu.memory_space<vmem>>, %arg9: memref<32x32xf32, #tpu.memory_space<vmem>>, %arg10: memref<32x32xf32, #tpu.memory_space<vmem>>, %arg11: memref<32x32xf32, #tpu.memory_space<vmem>>, %arg12: memref<1x32xf32, #tpu.memory_space<vmem>>, %arg13: memref<1x32xf32, #tpu.memory_space<vmem>>, %arg14: memref<1x32xf32, #tpu.memory_space<vmem>>, %arg15: memref<1x32xf32, #tpu.memory_space<vmem>>, %arg16: memref<8x128xf32, #tpu.memory_space<vmem>>, %arg17: memref<8x32xf32, #tpu.memory_space<vmem>>) attributes {dimension_semantics = [#tpu.dimension_semantics<parallel>], iteration_bounds = array<i64: 1>, scalar_prefetch = 0 : i64, scratch_operands = 0 : i64, tpu.core_type = #tpu.core_type<tc>, window_params = [{transform_indices = @transform_0, window_bounds = array<i64: 8, 128, 32>}, {transform_indices = @transform_1, window_bounds = array<i64: 8, 32>}, {transform_indices = @transform_2, window_bounds = array<i64: 8, 128>}, {pipeline_mode = #tpu.pipeline_mode<synchronous>, transform_indices = @transform_3, window_bounds = array<i64: 32, 32>}, {pipeline_mode = #tpu.pipeline_mode<synchronous>, transform_indices = @transform_4, window_bounds = array<i64: 1, 32>}, {pipeline_mode = #tpu.pipeline_mode<synchronous>, transform_indices = @transform_5, window_bounds = array<i64: 32, 32>}, {pipeline_mode = #tpu.pipeline_mode<synchronous>, transform_indices = @transform_6, window_bounds = array<i64: 32, 32>}, {pipeline_mode = #tpu.pipeline_mode<synchronous>, transform_indices = @transform_7, window_bounds = array<i64: 32, 32>}, {pipeline_mode = #tpu.pipeline_mode<synchronous>, transform_indices = @transform_8, window_bounds = array<i64: 32, 32>}, {pipeline_mode = #tpu.pipeline_mode<synchronous>, transform_indices = @transform_9, window_bounds = array<i64: 32, 32>}, {pipeline_mode = #tpu.pipeline_mode<synchronous>, transform_indices = @transform_10, window_bounds = array<i64: 32, 32>}, {pipeline_mode = #tpu.pipeline_mode<synchronous>, transform_indices = @transform_11, window_bounds = array<i64: 1, 32>}, {pipeline_mode = #tpu.pipeline_mode<synchronous>, transform_indices = @transform_12, window_bounds = array<i64: 1, 32>}, {pipeline_mode = #tpu.pipeline_mode<synchronous>, transform_indices = @transform_13, window_bounds = array<i64: 1, 32>}, {pipeline_mode = #tpu.pipeline_mode<synchronous>, transform_indices = @transform_14, window_bounds = array<i64: 1, 32>}, {transform_indices = @transform_15, window_bounds = array<i64: 8, 128>}, {transform_indices = @transform_16, window_bounds = array<i64: 8, 32>}]} {
    %c0 = arith.constant 0 : index
    %c0_0 = arith.constant 0 : index
    %c0_1 = arith.constant 0 : index
    %0 = vector.load %arg1[%c0, %c0_0, %c0_1] : memref<8x128x32xf32, #tpu.memory_space<vmem>>, vector<8x128x32xf32>
    %c0_2 = arith.constant 0 : index
    %c0_3 = arith.constant 0 : index
    %1 = vector.load %arg2[%c0_2, %c0_3] : memref<8x32xf32, #tpu.memory_space<vmem>>, vector<8x32xf32>
    %c0_4 = arith.constant 0 : index
    %c0_5 = arith.constant 0 : index
    %2 = vector.load %arg3[%c0_4, %c0_5] : memref<8x128xf32, #tpu.memory_space<vmem>>, vector<8x128xf32>
    %c0_6 = arith.constant 0 : index
    %c0_7 = arith.constant 0 : index
    %3 = vector.load %arg4[%c0_6, %c0_7] : memref<32x32xf32, #tpu.memory_space<vmem>>, vector<32x32xf32>
    %cst = arith.constant dense<0.000000e+00> : vector<8x32xf32>
    %4 = tpu.matmul %1, %3, %cst {dimension_numbers = #tpu.dot_dimension_numbers<[1], [0], [0], [1], [0, 0, 1, 1], [], []>} : vector<8x32xf32>, vector<32x32xf32>, vector<8x32xf32> -> vector<8x32xf32>
    %c0_8 = arith.constant 0 : index
    %c0_9 = arith.constant 0 : index
    %5 = vector.load %arg5[%c0_8, %c0_9] : memref<1x32xf32, #tpu.memory_space<vmem>>, vector<1x32xf32>
    %6 = vector.broadcast %5 : vector<1x32xf32> to vector<8x32xf32>
    %7 = arith.addf %4, %6 : vector<8x32xf32>
    %8 = vector.shape_cast %7 : vector<8x32xf32> to vector<8x1x32xf32>
    %9 = vector.broadcast %8 : vector<8x1x32xf32> to vector<8x128x32xf32>
    %10 = arith.mulf %9, %0 : vector<8x128x32xf32>
    %cst_10 = arith.constant dense<0.000000e+00> : vector<8x128xf32>
    %11 = vector.multi_reduction <add>, %10, %cst_10 [2] : vector<8x128x32xf32> to vector<8x128xf32>
    %cst_11 = arith.constant 0.000000e+00 : f32
    %12 = vector.broadcast %cst_11 : f32 to vector<8x128xf32>
    %13 = arith.cmpf ogt, %2, %12 : vector<8x128xf32>
    %cst_12 = arith.constant 0xFF800000 : f32
    %14 = vector.broadcast %cst_12 : f32 to vector<8x128xf32>
    %15 = arith.select %13, %14, %11 : vector<8x128xi1>, vector<8x128xf32>
    %c0_13 = arith.constant 0 : index
    %c0_14 = arith.constant 0 : index
    %16 = vector.load %arg16[%c0_13, %c0_14] : memref<8x128xf32, #tpu.memory_space<vmem>>, vector<8x128xf32>
    tpu.vector_store %arg16[%c0_13, %c0_14], %15 {strides = array<i32>} : memref<8x128xf32, #tpu.memory_space<vmem>>, vector<8x128xf32>,
    %cst_15 = arith.constant dense<0xFF800000> : vector<8xf32>
    %17 = vector.multi_reduction <maximumf>, %15, %cst_15 [1] : vector<8x128xf32> to vector<8xf32>
    %18 = vector.shape_cast %17 : vector<8xf32> to vector<8x1xf32>
    %19 = vector.broadcast %18 : vector<8x1xf32> to vector<8x128xf32>
    %20 = arith.subf %15, %19 : vector<8x128xf32>
    %21 = math.exp %20 : vector<8x128xf32>
    %cst_16 = arith.constant dense<0.000000e+00> : vector<8xf32>
    %22 = vector.multi_reduction <add>, %21, %cst_16 [1] : vector<8x128xf32> to vector<8xf32>
    %23 = vector.shape_cast %22 : vector<8xf32> to vector<8x1xf32>
    %24 = vector.broadcast %23 : vector<8x1xf32> to vector<8x128xf32>
    %25 = arith.divf %21, %24 : vector<8x128xf32>
    %26 = vector.shape_cast %25 : vector<8x128xf32> to vector<8x128x1xf32>
    %27 = vector.broadcast %26 : vector<8x128x1xf32> to vector<8x128x32xf32>
    %28 = arith.mulf %27, %0 : vector<8x128x32xf32>
    %cst_17 = arith.constant dense<0.000000e+00> : vector<8x32xf32>
    %29 = vector.multi_reduction <add>, %28, %cst_17 [1] : vector<8x128x32xf32> to vector<8x32xf32>
    %c0_18 = arith.constant 0 : index
    %c0_19 = arith.constant 0 : index
    %30 = vector.load %arg6[%c0_18, %c0_19] : memref<32x32xf32, #tpu.memory_space<vmem>>, vector<32x32xf32>
    %cst_20 = arith.constant dense<0.000000e+00> : vector<8x32xf32>
    %31 = tpu.matmul %29, %30, %cst_20 {dimension_numbers = #tpu.dot_dimension_numbers<[1], [0], [0], [1], [0, 0, 1, 1], [], []>} : vector<8x32xf32>, vector<32x32xf32>, vector<8x32xf32> -> vector<8x32xf32>
    %c0_21 = arith.constant 0 : index
    %c0_22 = arith.constant 0 : index
    %32 = vector.load %arg9[%c0_21, %c0_22] : memref<32x32xf32, #tpu.memory_space<vmem>>, vector<32x32xf32>
    %cst_23 = arith.constant dense<0.000000e+00> : vector<8x32xf32>
    %33 = tpu.matmul %1, %32, %cst_23 {dimension_numbers = #tpu.dot_dimension_numbers<[1], [0], [0], [1], [0, 0, 1, 1], [], []>} : vector<8x32xf32>, vector<32x32xf32>, vector<8x32xf32> -> vector<8x32xf32>
    %34 = arith.addf %31, %33 : vector<8x32xf32>
    %c0_24 = arith.constant 0 : index
    %c0_25 = arith.constant 0 : index
    %35 = vector.load %arg12[%c0_24, %c0_25] : memref<1x32xf32, #tpu.memory_space<vmem>>, vector<1x32xf32>
    %36 = vector.broadcast %35 : vector<1x32xf32> to vector<8x32xf32>
    %37 = arith.addf %34, %36 : vector<8x32xf32>
    %38 = arith.negf %37 : vector<8x32xf32>
    %39 = math.exp %38 : vector<8x32xf32>
    %cst_26 = arith.constant 1.000000e+00 : f32
    %40 = vector.broadcast %cst_26 : f32 to vector<8x32xf32>
    %41 = arith.addf %40, %39 : vector<8x32xf32>
    %42 = arith.divf %40, %41 : vector<8x32xf32>
    %c0_27 = arith.constant 0 : index
    %c0_28 = arith.constant 0 : index
    %43 = vector.load %arg7[%c0_27, %c0_28] : memref<32x32xf32, #tpu.memory_space<vmem>>, vector<32x32xf32>
    %cst_29 = arith.constant dense<0.000000e+00> : vector<8x32xf32>
    %44 = tpu.matmul %29, %43, %cst_29 {dimension_numbers = #tpu.dot_dimension_numbers<[1], [0], [0], [1], [0, 0, 1, 1], [], []>} : vector<8x32xf32>, vector<32x32xf32>, vector<8x32xf32> -> vector<8x32xf32>
    %c0_30 = arith.constant 0 : index
    %c0_31 = arith.constant 0 : index
    %45 = vector.load %arg10[%c0_30, %c0_31] : memref<32x32xf32, #tpu.memory_space<vmem>>, vector<32x32xf32>
    %cst_32 = arith.constant dense<0.000000e+00> : vector<8x32xf32>
    %46 = tpu.matmul %1, %45, %cst_32 {dimension_numbers = #tpu.dot_dimension_numbers<[1], [0], [0], [1], [0, 0, 1, 1], [], []>} : vector<8x32xf32>, vector<32x32xf32>, vector<8x32xf32> -> vector<8x32xf32>
    %47 = arith.addf %44, %46 : vector<8x32xf32>
    %c0_33 = arith.constant 0 : index
    %c0_34 = arith.constant 0 : index
    %48 = vector.load %arg13[%c0_33, %c0_34] : memref<1x32xf32, #tpu.memory_space<vmem>>, vector<1x32xf32>
    %49 = vector.broadcast %48 : vector<1x32xf32> to vector<8x32xf32>
    %50 = arith.addf %47, %49 : vector<8x32xf32>
    %51 = arith.negf %50 : vector<8x32xf32>
    %52 = math.exp %51 : vector<8x32xf32>
    %cst_35 = arith.constant 1.000000e+00 : f32
    %53 = vector.broadcast %cst_35 : f32 to vector<8x32xf32>
    %54 = arith.addf %53, %52 : vector<8x32xf32>
    %55 = arith.divf %53, %54 : vector<8x32xf32>
    %c0_36 = arith.constant 0 : index
    %c0_37 = arith.constant 0 : index
    %56 = vector.load %arg8[%c0_36, %c0_37] : memref<32x32xf32, #tpu.memory_space<vmem>>, vector<32x32xf32>
    %cst_38 = arith.constant dense<0.000000e+00> : vector<8x32xf32>
    %57 = tpu.matmul %29, %56, %cst_38 {dimension_numbers = #tpu.dot_dimension_numbers<[1], [0], [0], [1], [0, 0, 1, 1], [], []>} : vector<8x32xf32>, vector<32x32xf32>, vector<8x32xf32> -> vector<8x32xf32>
    %c0_39 = arith.constant 0 : index
    %c0_40 = arith.constant 0 : index
    %58 = vector.load %arg14[%c0_39, %c0_40] : memref<1x32xf32, #tpu.memory_space<vmem>>, vector<1x32xf32>
    %59 = vector.broadcast %58 : vector<1x32xf32> to vector<8x32xf32>
    %60 = arith.addf %57, %59 : vector<8x32xf32>
    %c0_41 = arith.constant 0 : index
    %c0_42 = arith.constant 0 : index
    %61 = vector.load %arg11[%c0_41, %c0_42] : memref<32x32xf32, #tpu.memory_space<vmem>>, vector<32x32xf32>
    %cst_43 = arith.constant dense<0.000000e+00> : vector<8x32xf32>
    %62 = tpu.matmul %1, %61, %cst_43 {dimension_numbers = #tpu.dot_dimension_numbers<[1], [0], [0], [1], [0, 0, 1, 1], [], []>} : vector<8x32xf32>, vector<32x32xf32>, vector<8x32xf32> -> vector<8x32xf32>
    %c0_44 = arith.constant 0 : index
    %c0_45 = arith.constant 0 : index
    %63 = vector.load %arg15[%c0_44, %c0_45] : memref<1x32xf32, #tpu.memory_space<vmem>>, vector<1x32xf32>
    %64 = vector.broadcast %63 : vector<1x32xf32> to vector<8x32xf32>
    %65 = arith.addf %62, %64 : vector<8x32xf32>
    %66 = arith.mulf %42, %65 : vector<8x32xf32>
    %67 = arith.addf %60, %66 : vector<8x32xf32>
    %68 = math.tanh %67 : vector<8x32xf32>
    %69 = arith.subf %1, %68 : vector<8x32xf32>
    %70 = arith.mulf %55, %69 : vector<8x32xf32>
    %71 = arith.addf %68, %70 : vector<8x32xf32>
    %c0_46 = arith.constant 0 : index
    %c0_47 = arith.constant 0 : index
    %72 = vector.load %arg17[%c0_46, %c0_47] : memref<8x32xf32, #tpu.memory_space<vmem>>, vector<8x32xf32>
    tpu.vector_store %arg17[%c0_46, %c0_47], %71 {strides = array<i32>} : memref<8x32xf32, #tpu.memory_space<vmem>>, vector<8x32xf32>,
    return
  }
  func.func @transform_0(%arg0: i32) -> (i32, i32, i32) {
    %c0_i32 = arith.constant 0 : i32
    %c0_i32_0 = arith.constant 0 : i32
    %c0_i32_1 = arith.constant 0 : i32
    return %arg0, %c0_i32, %c0_i32_0 : i32, i32, i32
  }
  func.func @transform_1(%arg0: i32) -> (i32, i32) {
    %c0_i32 = arith.constant 0 : i32
    %c0_i32_0 = arith.constant 0 : i32
    return %arg0, %c0_i32 : i32, i32
  }
  func.func @transform_2(%arg0: i32) -> (i32, i32) {
    %c0_i32 = arith.constant 0 : i32
    %c0_i32_0 = arith.constant 0 : i32
    return %arg0, %c0_i32 : i32, i32
  }
  func.func @transform_3(%arg0: i32) -> (i32, i32) {
    %c0_i32 = arith.constant 0 : i32
    %c0_i32_0 = arith.constant 0 : i32
    %c0_i32_1 = arith.constant 0 : i32
    return %c0_i32, %c0_i32_0 : i32, i32
  }
  func.func @transform_4(%arg0: i32) -> (i32, i32) {
    %c0_i32 = arith.constant 0 : i32
    %c0_i32_0 = arith.constant 0 : i32
    %c0_i32_1 = arith.constant 0 : i32
    return %c0_i32, %c0_i32_0 : i32, i32
  }
  func.func @transform_5(%arg0: i32) -> (i32, i32) {
    %c0_i32 = arith.constant 0 : i32
    %c0_i32_0 = arith.constant 0 : i32
    %c0_i32_1 = arith.constant 0 : i32
    return %c0_i32, %c0_i32_0 : i32, i32
  }
  func.func @transform_6(%arg0: i32) -> (i32, i32) {
    %c0_i32 = arith.constant 0 : i32
    %c0_i32_0 = arith.constant 0 : i32
    %c0_i32_1 = arith.constant 0 : i32
    return %c0_i32, %c0_i32_0 : i32, i32
  }
  func.func @transform_7(%arg0: i32) -> (i32, i32) {
    %c0_i32 = arith.constant 0 : i32
    %c0_i32_0 = arith.constant 0 : i32
    %c0_i32_1 = arith.constant 0 : i32
    return %c0_i32, %c0_i32_0 : i32, i32
  }
  func.func @transform_8(%arg0: i32) -> (i32, i32) {
    %c0_i32 = arith.constant 0 : i32
    %c0_i32_0 = arith.constant 0 : i32
    %c0_i32_1 = arith.constant 0 : i32
    return %c0_i32, %c0_i32_0 : i32, i32
  }
  func.func @transform_9(%arg0: i32) -> (i32, i32) {
    %c0_i32 = arith.constant 0 : i32
    %c0_i32_0 = arith.constant 0 : i32
    %c0_i32_1 = arith.constant 0 : i32
    return %c0_i32, %c0_i32_0 : i32, i32
  }
  func.func @transform_10(%arg0: i32) -> (i32, i32) {
    %c0_i32 = arith.constant 0 : i32
    %c0_i32_0 = arith.constant 0 : i32
    %c0_i32_1 = arith.constant 0 : i32
    return %c0_i32, %c0_i32_0 : i32, i32
  }
  func.func @transform_11(%arg0: i32) -> (i32, i32) {
    %c0_i32 = arith.constant 0 : i32
    %c0_i32_0 = arith.constant 0 : i32
    %c0_i32_1 = arith.constant 0 : i32
    return %c0_i32, %c0_i32_0 : i32, i32
  }
  func.func @transform_12(%arg0: i32) -> (i32, i32) {
    %c0_i32 = arith.constant 0 : i32
    %c0_i32_0 = arith.constant 0 : i32
    %c0_i32_1 = arith.constant 0 : i32
    return %c0_i32, %c0_i32_0 : i32, i32
  }
  func.func @transform_13(%arg0: i32) -> (i32, i32) {
    %c0_i32 = arith.constant 0 : i32
    %c0_i32_0 = arith.constant 0 : i32
    %c0_i32_1 = arith.constant 0 : i32
    return %c0_i32, %c0_i32_0 : i32, i32
  }
  func.func @transform_14(%arg0: i32) -> (i32, i32) {
    %c0_i32 = arith.constant 0 : i32
    %c0_i32_0 = arith.constant 0 : i32
    %c0_i32_1 = arith.constant 0 : i32
    return %c0_i32, %c0_i32_0 : i32, i32
  }
  func.func @transform_15(%arg0: i32) -> (i32, i32) {
    %c0_i32 = arith.constant 0 : i32
    %c0_i32_0 = arith.constant 0 : i32
    return %arg0, %c0_i32 : i32, i32
  }
  func.func @transform_16(%arg0: i32) -> (i32, i32) {
    %c0_i32 = arith.constant 0 : i32
    %c0_i32_0 = arith.constant 0 : i32
    return %arg0, %c0_i32 : i32, i32
  }
}

</mosaic_0001>

<llo_original>
// kernel: tpu_custom_call.1
$region0: #{tpu_custom_call.1}
  #allocation0 [shape = 'u32[]', space=smem, size = 0x4, offset = 0x4, fixed_abs, tag = 'smem constant byte address 0x4 - core index']
  #allocation1 [shape = 'u32[72,128]{1,0:T(1,128)}', space=vmem, size = 0x9000, scoped, tag = 'internal scratch']
  %s0 = inlined_call_operand.vmem [shape: f32[8,128,32], index: 0, kind: input, shape index: {}]
  %s1 = inlined_call_operand.vmem [shape: f32[8,32], index: 1, kind: input, shape index: {}]
  %s2 = inlined_call_operand.vmem [shape: f32[8,128], index: 2, kind: input, shape index: {}]
  %s3 = inlined_call_operand.vmem [shape: f32[32,32], index: 3, kind: input, shape index: {}]
  %s4 = inlined_call_operand.vmem [shape: f32[1,32], index: 4, kind: input, shape index: {}]
  %s5 = inlined_call_operand.vmem [shape: f32[32,32], index: 5, kind: input, shape index: {}]
  %s6 = inlined_call_operand.vmem [shape: f32[32,32], index: 6, kind: input, shape index: {}]
  %s7 = inlined_call_operand.vmem [shape: f32[32,32], index: 7, kind: input, shape index: {}]
  %s8 = inlined_call_operand.vmem [shape: f32[32,32], index: 8, kind: input, shape index: {}]
  %s9 = inlined_call_operand.vmem [shape: f32[32,32], index: 9, kind: input, shape index: {}]
  %s10 = inlined_call_operand.vmem [shape: f32[32,32], index: 10, kind: input, shape index: {}]
  %s11 = inlined_call_operand.vmem [shape: f32[1,32], index: 11, kind: input, shape index: {}]
  %s12 = inlined_call_operand.vmem [shape: f32[1,32], index: 12, kind: input, shape index: {}]
  %s13 = inlined_call_operand.vmem [shape: f32[1,32], index: 13, kind: input, shape index: {}]
  %s14 = inlined_call_operand.vmem [shape: f32[1,32], index: 14, kind: input, shape index: {}]
  %s15 = inlined_call_operand.hbm [shape: f32[8,128], index: 15, kind: output, shape index: {0}]
  %s16 = inlined_call_operand.hbm [shape: f32[8,32], index: 16, kind: output, shape index: {1}]
  %17 = xla_tuple %s15, %s16
  %s18 = sld [smem:[#allocation0]]
  $region78: #{tpu_custom_call.1} parent=0
    _
  %s20 = ssub.s32 1, %s18
  %s21 = scalar_select 0, %s20, %s18
  $region1: #{tpu_custom_call.1} parent=0
    #allocation2 [shape = 'u8[4096]{0}', space=vmem, size = 0x1000, scoped, tag = 'output window, operand 0, single buffered']
    #allocation3 [shape = 's32[1]{0}', space=sflag, size = 0x4, scoped, tag = 'scoped memory for tpu_custom_call.1']
    #allocation4 [shape = 'u8[4096]{0}', space=vmem, size = 0x1000, scoped, tag = 'output window, operand 1, single buffered']
    #allocation5 [shape = 's32[1]{0}', space=sflag, size = 0x4, scoped, tag = 'scoped memory for tpu_custom_call.1']
    %22 = vsyncpa [#allocation3], 0
    %23 = vsyncpa [#allocation5], 0
    // Predicated region
    $region2: #{tpu_custom_call.1} parent=1 // pred_check
      _
    $region3: #{tpu_custom_call.1} parent=1 // pred_check_branch
      %25 = sbr.rel (0) target = $region5
    $region4: #{tpu_custom_call.1} parent=1 // pred_region
      _
    $region5: #{tpu_custom_call.1} parent=1 // pred_fallthru
      _
    // Predicated region
    $region6: #{tpu_custom_call.1} parent=1 // pred_check
      _
    $region7: #{tpu_custom_call.1} parent=1 // pred_check_branch
      %27 = sbr.rel (0) target = $region9
    $region8: #{tpu_custom_call.1} parent=1 // pred_region
      _
    $region9: #{tpu_custom_call.1} parent=1 // pred_fallthru
      _
    // Predicated region
    $region10: #{tpu_custom_call.1} parent=1 // pred_check
      _
    $region11: #{tpu_custom_call.1} parent=1 // pred_check_branch
      %29 = sbr.rel (0) target = $region13
    $region12: #{tpu_custom_call.1} parent=1 // pred_region
      _
    $region13: #{tpu_custom_call.1} parent=1 // pred_fallthru
      _
    // Predicated region
    $region14: #{tpu_custom_call.1} parent=1 // pred_check
      _
    $region15: #{tpu_custom_call.1} parent=1 // pred_check_branch
      %31 = sbr.rel (0) target = $region17
    $region16: #{tpu_custom_call.1} parent=1 // pred_region
      _
    $region17: #{tpu_custom_call.1} parent=1 // pred_fallthru
      _
    // Predicated region
    $region18: #{tpu_custom_call.1} parent=1 // pred_check
      _
    $region19: #{tpu_custom_call.1} parent=1 // pred_check_branch
      %33 = sbr.rel (0) target = $region21
    $region20: #{tpu_custom_call.1} parent=1 // pred_region
      _
    $region21: #{tpu_custom_call.1} parent=1 // pred_fallthru
      _
    // Predicated region
    $region22: #{tpu_custom_call.1} parent=1 // pred_check
      _
    $region23: #{tpu_custom_call.1} parent=1 // pred_check_branch
      %35 = sbr.rel (0) target = $region25
    $region24: #{tpu_custom_call.1} parent=1 // pred_region
      _
    $region25: #{tpu_custom_call.1} parent=1 // pred_fallthru
      _
    // Predicated region
    $region26: #{tpu_custom_call.1} parent=1 // pred_check
      _
    $region27: #{tpu_custom_call.1} parent=1 // pred_check_branch
      %37 = sbr.rel (0) target = $region29
    $region28: #{tpu_custom_call.1} parent=1 // pred_region
      _
    $region29: #{tpu_custom_call.1} parent=1 // pred_fallthru
      _
    // Predicated region
    $region30: #{tpu_custom_call.1} parent=1 // pred_check
      _
    $region31: #{tpu_custom_call.1} parent=1 // pred_check_branch
      %39 = sbr.rel (0) target = $region33
    $region32: #{tpu_custom_call.1} parent=1 // pred_region
      _
    $region33: #{tpu_custom_call.1} parent=1 // pred_fallthru
      _
    // Predicated region
    $region34: #{tpu_custom_call.1} parent=1 // pred_check
      _
    $region35: #{tpu_custom_call.1} parent=1 // pred_check_branch
      %41 = sbr.rel (0) target = $region37
    $region36: #{tpu_custom_call.1} parent=1 // pred_region
      _
    $region37: #{tpu_custom_call.1} parent=1 // pred_fallthru
      _
    // Predicated region
    $region38: #{tpu_custom_call.1} parent=1 // pred_check
      _
    $region39: #{tpu_custom_call.1} parent=1 // pred_check_branch
      %43 = sbr.rel (0) target = $region41
    $region40: #{tpu_custom_call.1} parent=1 // pred_region
      _
    $region41: #{tpu_custom_call.1} parent=1 // pred_fallthru
      _
    // Predicated region
    $region42: #{tpu_custom_call.1} parent=1 // pred_check
      _
    $region43: #{tpu_custom_call.1} parent=1 // pred_check_branch
      %45 = sbr.rel (0) target = $region45
    $region44: #{tpu_custom_call.1} parent=1 // pred_region
      _
    $region45: #{tpu_custom_call.1} parent=1 // pred_fallthru
      _
    // Predicated region
    $region46: #{tpu_custom_call.1} parent=1 // pred_check
      _
    $region47: #{tpu_custom_call.1} parent=1 // pred_check_branch
      %47 = sbr.rel (0) target = $region49
    $region48: #{tpu_custom_call.1} parent=1 // pred_region
      _
    $region49: #{tpu_custom_call.1} parent=1 // pred_fallthru
      _
    // Predicated region
    $region50: #{tpu_custom_call.1} parent=1 // pred_check
      _
    $region51: #{tpu_custom_call.1} parent=1 // pred_check_branch
      %49 = sbr.rel (0) target = $region53
    $region52: #{tpu_custom_call.1} parent=1 // pred_region
      _
    $region53: #{tpu_custom_call.1} parent=1 // pred_fallthru
      _
    // Predicated region
    $region54: #{tpu_custom_call.1} parent=1 // pred_check
      _
    $region55: #{tpu_custom_call.1} parent=1 // pred_check_branch
      %51 = sbr.rel (0) target = $region57
    $region56: #{tpu_custom_call.1} parent=1 // pred_region
      _
    $region57: #{tpu_custom_call.1} parent=1 // pred_fallthru
      _
    // Predicated region
    $region58: #{tpu_custom_call.1} parent=1 // pred_check
      _
    $region59: #{tpu_custom_call.1} parent=1 // pred_check_branch
      %53 = sbr.rel (0) target = $region61
    $region60: #{tpu_custom_call.1} parent=1 // pred_region
      _
    $region61: #{tpu_custom_call.1} parent=1 // pred_fallthru
      _
    %v54 = vld [vmem:[%s0] sm:$0xff]
    %v55 = vld [vmem:[%s0 + $0x8] sm:$0xff]
    %v56 = vld [vmem:[%s0 + $0x10] sm:$0xff]
    %v57 = vld [vmem:[%s0 + $0x18] sm:$0xff]
    %v58 = vld [vmem:[%s0 + $0x20] sm:$0xff]
    %v59 = vld [vmem:[%s0 + $0x28] sm:$0xff]
    %v60 = vld [vmem:[%s0 + $0x30] sm:$0xff]
    %v61 = vld [vmem:[%s0 + $0x38] sm:$0xff]
    %v62 = vld [vmem:[%s0 + $0x40] sm:$0xff]
    %v63 = vld [vmem:[%s0 + $0x48] sm:$0xff]
    %v64 = vld [vmem:[%s0 + $0x50] sm:$0xff]
    %v65 = vld [vmem:[%s0 + $0x58] sm:$0xff]
    %v66 = vld [vmem:[%s0 + $0x60] sm:$0xff]
    %v67 = vld [vmem:[%s0 + $0x68] sm:$0xff]
    %v68 = vld [vmem:[%s0 + $0x70] sm:$0xff]
    %v69 = vld [vmem:[%s0 + $0x78] sm:$0xff]
    %v70 = vld [vmem:[%s0 + $0x80] sm:$0xff]
    %v71 = vld [vmem:[%s0 + $0x88] sm:$0xff]
    %v72 = vld [vmem:[%s0 + $0x90] sm:$0xff]
    %v73 = vld [vmem:[%s0 + $0x98] sm:$0xff]
    %v74 = vld [vmem:[%s0 + $0xa0] sm:$0xff]
    %v75 = vld [vmem:[%s0 + $0xa8] sm:$0xff]
    %v76 = vld [vmem:[%s0 + $0xb0] sm:$0xff]
    %v77 = vld [vmem:[%s0 + $0xb8] sm:$0xff]
    %v78 = vld [vmem:[%s0 + $0xc0] sm:$0xff]
    %v79 = vld [vmem:[%s0 + $0xc8] sm:$0xff]
    %v80 = vld [vmem:[%s0 + $0xd0] sm:$0xff]
    %v81 = vld [vmem:[%s0 + $0xd8] sm:$0xff]
    %v82 = vld [vmem:[%s0 + $0xe0] sm:$0xff]
    %v83 = vld [vmem:[%s0 + $0xe8] sm:$0xff]
    %v84 = vld [vmem:[%s0 + $0xf0] sm:$0xff]
    %v85 = vld [vmem:[%s0 + $0xf8] sm:$0xff]
    %v86 = vld [vmem:[%s0 + $0x100] sm:$0xff]
    %v87 = vld [vmem:[%s0 + $0x108] sm:$0xff]
    %v88 = vld [vmem:[%s0 + $0x110] sm:$0xff]
    %v89 = vld [vmem:[%s0 + $0x118] sm:$0xff]
    %v90 = vld [vmem:[%s0 + $0x120] sm:$0xff]
    %v91 = vld [vmem:[%s0 + $0x128] sm:$0xff]
    %v92 = vld [vmem:[%s0 + $0x130] sm:$0xff]
    %v93 = vld [vmem:[%s0 + $0x138] sm:$0xff]
    %v94 = vld [vmem:[%s0 + $0x140] sm:$0xff]
    %v95 = vld [vmem:[%s0 + $0x148] sm:$0xff]
    %v96 = vld [vmem:[%s0 + $0x150] sm:$0xff]
    %v97 = vld [vmem:[%s0 + $0x158] sm:$0xff]
    %v98 = vld [vmem:[%s0 + $0x160] sm:$0xff]
    %v99 = vld [vmem:[%s0 + $0x168] sm:$0xff]
    %v100 = vld [vmem:[%s0 + $0x170] sm:$0xff]
    %v101 = vld [vmem:[%s0 + $0x178] sm:$0xff]
    %v102 = vld [vmem:[%s0 + $0x180] sm:$0xff]
    %v103 = vld [vmem:[%s0 + $0x188] sm:$0xff]
    %v104 = vld [vmem:[%s0 + $0x190] sm:$0xff]
    %v105 = vld [vmem:[%s0 + $0x198] sm:$0xff]
    %v106 = vld [vmem:[%s0 + $0x1a0] sm:$0xff]
    %v107 = vld [vmem:[%s0 + $0x1a8] sm:$0xff]
    %v108 = vld [vmem:[%s0 + $0x1b0] sm:$0xff]
    %v109 = vld [vmem:[%s0 + $0x1b8] sm:$0xff]
    %v110 = vld [vmem:[%s0 + $0x1c0] sm:$0xff]
    %v111 = vld [vmem:[%s0 + $0x1c8] sm:$0xff]
    %v112 = vld [vmem:[%s0 + $0x1d0] sm:$0xff]
    %v113 = vld [vmem:[%s0 + $0x1d8] sm:$0xff]
    %v114 = vld [vmem:[%s0 + $0x1e0] sm:$0xff]
    %v115 = vld [vmem:[%s0 + $0x1e8] sm:$0xff]
    %v116 = vld [vmem:[%s0 + $0x1f0] sm:$0xff]
    %v117 = vld [vmem:[%s0 + $0x1f8] sm:$0xff]
    %v118 = vld [vmem:[%s0 + $0x200] sm:$0xff]
    %v119 = vld [vmem:[%s0 + $0x208] sm:$0xff]
    %v120 = vld [vmem:[%s0 + $0x210] sm:$0xff]
    %v121 = vld [vmem:[%s0 + $0x218] sm:$0xff]
    %v122 = vld [vmem:[%s0 + $0x220] sm:$0xff]
    %v123 = vld [vmem:[%s0 + $0x228] sm:$0xff]
    %v124 = vld [vmem:[%s0 + $0x230] sm:$0xff]
    %v125 = vld [vmem:[%s0 + $0x238] sm:$0xff]
    %v126 = vld [vmem:[%s0 + $0x240] sm:$0xff]
    %v127 = vld [vmem:[%s0 + $0x248] sm:$0xff]
    %v128 = vld [vmem:[%s0 + $0x250] sm:$0xff]
    %v129 = vld [vmem:[%s0 + $0x258] sm:$0xff]
    %v130 = vld [vmem:[%s0 + $0x260] sm:$0xff]
    %v131 = vld [vmem:[%s0 + $0x268] sm:$0xff]
    %v132 = vld [vmem:[%s0 + $0x270] sm:$0xff]
    %v133 = vld [vmem:[%s0 + $0x278] sm:$0xff]
    %v134 = vld [vmem:[%s0 + $0x280] sm:$0xff]
    %v135 = vld [vmem:[%s0 + $0x288] sm:$0xff]
    %v136 = vld [vmem:[%s0 + $0x290] sm:$0xff]
    %v137 = vld [vmem:[%s0 + $0x298] sm:$0xff]
    %v138 = vld [vmem:[%s0 + $0x2a0] sm:$0xff]
    %v139 = vld [vmem:[%s0 + $0x2a8] sm:$0xff]
    %v140 = vld [vmem:[%s0 + $0x2b0] sm:$0xff]
    %v141 = vld [vmem:[%s0 + $0x2b8] sm:$0xff]
    %v142 = vld [vmem:[%s0 + $0x2c0] sm:$0xff]
    %v143 = vld [vmem:[%s0 + $0x2c8] sm:$0xff]
    %v144 = vld [vmem:[%s0 + $0x2d0] sm:$0xff]
    %v145 = vld [vmem:[%s0 + $0x2d8] sm:$0xff]
    %v146 = vld [vmem:[%s0 + $0x2e0] sm:$0xff]
    %v147 = vld [vmem:[%s0 + $0x2e8] sm:$0xff]
    %v148 = vld [vmem:[%s0 + $0x2f0] sm:$0xff]
    %v149 = vld [vmem:[%s0 + $0x2f8] sm:$0xff]
    %v150 = vld [vmem:[%s0 + $0x300] sm:$0xff]
    %v151 = vld [vmem:[%s0 + $0x308] sm:$0xff]
    %v152 = vld [vmem:[%s0 + $0x310] sm:$0xff]
    %v153 = vld [vmem:[%s0 + $0x318] sm:$0xff]
    %v154 = vld [vmem:[%s0 + $0x320] sm:$0xff]
    %v155 = vld [vmem:[%s0 + $0x328] sm:$0xff]
    %v156 = vld [vmem:[%s0 + $0x330] sm:$0xff]
    %v157 = vld [vmem:[%s0 + $0x338] sm:$0xff]
    %v158 = vld [vmem:[%s0 + $0x340] sm:$0xff]
    %v159 = vld [vmem:[%s0 + $0x348] sm:$0xff]
    %v160 = vld [vmem:[%s0 + $0x350] sm:$0xff]
    %v161 = vld [vmem:[%s0 + $0x358] sm:$0xff]
    %v162 = vld [vmem:[%s0 + $0x360] sm:$0xff]
    %v163 = vld [vmem:[%s0 + $0x368] sm:$0xff]
    %v164 = vld [vmem:[%s0 + $0x370] sm:$0xff]
    %v165 = vld [vmem:[%s0 + $0x378] sm:$0xff]
    %v166 = vld [vmem:[%s0 + $0x380] sm:$0xff]
    %v167 = vld [vmem:[%s0 + $0x388] sm:$0xff]
    %v168 = vld [vmem:[%s0 + $0x390] sm:$0xff]
    %v169 = vld [vmem:[%s0 + $0x398] sm:$0xff]
    %v170 = vld [vmem:[%s0 + $0x3a0] sm:$0xff]
    %v171 = vld [vmem:[%s0 + $0x3a8] sm:$0xff]
    %v172 = vld [vmem:[%s0 + $0x3b0] sm:$0xff]
    %v173 = vld [vmem:[%s0 + $0x3b8] sm:$0xff]
    %v174 = vld [vmem:[%s0 + $0x3c0] sm:$0xff]
    %v175 = vld [vmem:[%s0 + $0x3c8] sm:$0xff]
    %v176 = vld [vmem:[%s0 + $0x3d0] sm:$0xff]
    %v177 = vld [vmem:[%s0 + $0x3d8] sm:$0xff]
    %v178 = vld [vmem:[%s0 + $0x3e0] sm:$0xff]
    %v179 = vld [vmem:[%s0 + $0x3e8] sm:$0xff]
    %v180 = vld [vmem:[%s0 + $0x3f0] sm:$0xff]
    %v181 = vld [vmem:[%s0 + $0x3f8] sm:$0xff]
    %v182 = vld [vmem:[%s1] sm:$0xff]
    %v183 = vld [vmem:[%s2] sm:$0xff]
    %v184 = vld [vmem:[%s3] sm:$0xff]
    %v185 = vld [vmem:[%s3 + $0x8] sm:$0xff]
    %v186 = vld [vmem:[%s3 + $0x10] sm:$0xff]
    %v187 = vld [vmem:[%s3 + $0x18] sm:$0xff]
    %v188 = vld [vmem:[%s4] sm:$0x1]
    %v190 = vperm.slane %v188, 0
    %vm192 = vcmask 261120
    %v194 = vsel %vm192, %v182, 0
    %196 = vmatpush.msra.mxu0 0.0
    %197 = vmatpush.msra.mxu0 0.0
    %198 = vmatpush.msra.mxu0 0.0
    %199 = vmatpush.msra.mxu0 0.0
    %200 = vmatpush.msra.mxu0 0.0
    %201 = vmatpush.msra.mxu0 0.0
    %202 = vmatpush.msra.mxu0 0.0
    %203 = vmatpush.msra.mxu0 0.0
    %204 = vmatpush.msra.mxu0 0.0
    %205 = vmatpush.msra.mxu0 0.0
    %206 = vmatpush.msra.mxu0 0.0
    %207 = vmatpush.msra.mxu0 0.0
    %208 = vmatpush.msra.mxu0 %v187
    %209 = vmatpush.msra.mxu0 %v186
    %210 = vmatpush.msra.mxu0 %v185
    %211 = vmatpush.msra.mxu0 %v184
    %212 = vmatmul.f32.gmra.mxu0 %v194
    %v213 = vpop.f32.mrf.mxu0
    %v214 = vadd.f32 %v190, %v213
    %215 = vdwg.mxu0
    %v217 = vrot.slane %v214, 1
    %v218 = vrot.slane %v214, 2
    %v219 = vrot.slane %v214, 3
    %v220 = vrot.slane %v214, 4
    %v221 = vrot.slane %v214, 5
    %v222 = vrot.slane %v214, 6
    %v223 = vrot.slane %v214, 7
    %v224 = vperm.slane %v214, 0
    %v225 = vperm.slane %v217, 0
    %v226 = vperm.slane %v218, 0
    %v227 = vperm.slane %v219, 0
    %v228 = vperm.slane %v220, 0
    %v229 = vperm.slane %v221, 0
    %v230 = vperm.slane %v222, 0
    %v231 = vperm.slane %v223, 0
    %v240 = vmul.f32 %v224, %v54
    %v241 = vmul.f32 %v224, %v55
    %v242 = vmul.f32 %v224, %v56
    %v243 = vmul.f32 %v224, %v57
    %v244 = vmul.f32 %v224, %v58
    %v245 = vmul.f32 %v224, %v59
    %v246 = vmul.f32 %v224, %v60
    %v247 = vmul.f32 %v224, %v61
    %v248 = vmul.f32 %v224, %v62
    %v249 = vmul.f32 %v224, %v63
    %v250 = vmul.f32 %v224, %v64
    %v251 = vmul.f32 %v224, %v65
    %v252 = vmul.f32 %v224, %v66
    %v253 = vmul.f32 %v224, %v67
    %v254 = vmul.f32 %v224, %v68
    %v255 = vmul.f32 %v224, %v69
    %v256 = vmul.f32 %v225, %v70
    %v257 = vmul.f32 %v225, %v71
    %v258 = vmul.f32 %v225, %v72
    %v259 = vmul.f32 %v225, %v73
    %v260 = vmul.f32 %v225, %v74
    %v261 = vmul.f32 %v225, %v75
    %v262 = vmul.f32 %v225, %v76
    %v263 = vmul.f32 %v225, %v77
    %v264 = vmul.f32 %v225, %v78
    %v265 = vmul.f32 %v225, %v79
    %v266 = vmul.f32 %v225, %v80
    %v267 = vmul.f32 %v225, %v81
    %v268 = vmul.f32 %v225, %v82
    %v269 = vmul.f32 %v225, %v83
    %v270 = vmul.f32 %v225, %v84
    %v271 = vmul.f32 %v225, %v85
    %v272 = vmul.f32 %v226, %v86
    %v273 = vmul.f32 %v226, %v87
    %v274 = vmul.f32 %v226, %v88
    %v275 = vmul.f32 %v226, %v89
    %v276 = vmul.f32 %v226, %v90
    %v277 = vmul.f32 %v226, %v91
    %v278 = vmul.f32 %v226, %v92
    %v279 = vmul.f32 %v226, %v93
    %v280 = vmul.f32 %v226, %v94
    %v281 = vmul.f32 %v226, %v95
    %v282 = vmul.f32 %v226, %v96
    %v283 = vmul.f32 %v226, %v97
    %v284 = vmul.f32 %v226, %v98
    %v285 = vmul.f32 %v226, %v99
    %v286 = vmul.f32 %v226, %v100
    %v287 = vmul.f32 %v226, %v101
    %v288 = vmul.f32 %v227, %v102
    %v289 = vmul.f32 %v227, %v103
    %v290 = vmul.f32 %v227, %v104
    %v291 = vmul.f32 %v227, %v105
    %v292 = vmul.f32 %v227, %v106
    %v293 = vmul.f32 %v227, %v107
    %v294 = vmul.f32 %v227, %v108
    %v295 = vmul.f32 %v227, %v109
    %v296 = vmul.f32 %v227, %v110
    %v297 = vmul.f32 %v227, %v111
    %v298 = vmul.f32 %v227, %v112
    %v299 = vmul.f32 %v227, %v113
    %v300 = vmul.f32 %v227, %v114
    %v301 = vmul.f32 %v227, %v115
    %v302 = vmul.f32 %v227, %v116
    %v303 = vmul.f32 %v227, %v117
    %v304 = vmul.f32 %v228, %v118
    %v305 = vmul.f32 %v228, %v119
    %v306 = vmul.f32 %v228, %v120
    %v307 = vmul.f32 %v228, %v121
    %v308 = vmul.f32 %v228, %v122
    %v309 = vmul.f32 %v228, %v123
    %v310 = vmul.f32 %v228, %v124
    %v311 = vmul.f32 %v228, %v125
    %v312 = vmul.f32 %v228, %v126
    %v313 = vmul.f32 %v228, %v127
    %v314 = vmul.f32 %v228, %v128
    %v315 = vmul.f32 %v228, %v129
    %v316 = vmul.f32 %v228, %v130
    %v317 = vmul.f32 %v228, %v131
    %v318 = vmul.f32 %v228, %v132
    %v319 = vmul.f32 %v228, %v133
    %v320 = vmul.f32 %v229, %v134
    %v321 = vmul.f32 %v229, %v135
    %v322 = vmul.f32 %v229, %v136
    %v323 = vmul.f32 %v229, %v137
    %v324 = vmul.f32 %v229, %v138
    %v325 = vmul.f32 %v229, %v139
    %v326 = vmul.f32 %v229, %v140
    %v327 = vmul.f32 %v229, %v141
    %v328 = vmul.f32 %v229, %v142
    %v329 = vmul.f32 %v229, %v143
    %v330 = vmul.f32 %v229, %v144
    %v331 = vmul.f32 %v229, %v145
    %v332 = vmul.f32 %v229, %v146
    %v333 = vmul.f32 %v229, %v147
    %v334 = vmul.f32 %v229, %v148
    %v335 = vmul.f32 %v229, %v149
    %v336 = vmul.f32 %v230, %v150
    %v337 = vmul.f32 %v230, %v151
    %v338 = vmul.f32 %v230, %v152
    %v339 = vmul.f32 %v230, %v153
    %v340 = vmul.f32 %v230, %v154
    %v341 = vmul.f32 %v230, %v155
    %v342 = vmul.f32 %v230, %v156
    %v343 = vmul.f32 %v230, %v157
    %v344 = vmul.f32 %v230, %v158
    %v345 = vmul.f32 %v230, %v159
    %v346 = vmul.f32 %v230, %v160
    %v347 = vmul.f32 %v230, %v161
    %v348 = vmul.f32 %v230, %v162
    %v349 = vmul.f32 %v230, %v163
    %v350 = vmul.f32 %v230, %v164
    %v351 = vmul.f32 %v230, %v165
    %v352 = vmul.f32 %v231, %v166
    %v353 = vmul.f32 %v231, %v167
    %v354 = vmul.f32 %v231, %v168
    %v355 = vmul.f32 %v231, %v169
    %v356 = vmul.f32 %v231, %v170
    %v357 = vmul.f32 %v231, %v171
    %v358 = vmul.f32 %v231, %v172
    %v359 = vmul.f32 %v231, %v173
    %v360 = vmul.f32 %v231, %v174
    %v361 = vmul.f32 %v231, %v175
    %v362 = vmul.f32 %v231, %v176
    %v363 = vmul.f32 %v231, %v177
    %v364 = vmul.f32 %v231, %v178
    %v365 = vmul.f32 %v231, %v179
    %v366 = vmul.f32 %v231, %v180
    %v367 = vmul.f32 %v231, %v181
    %v368 = vsel %vm192, %v240, 0.0
    %369 = vadd.xlane.f32.xlu0 %v368
    %v370 = vpop.xlane.xlu0 %369
    %v371 = vsel %vm192, %v241, 0.0
    %372 = vadd.xlane.f32.xlu0 %v371
    %v373 = vpop.xlane.xlu0 %372
    %v374 = vsel %vm192, %v242, 0.0
    %375 = vadd.xlane.f32.xlu0 %v374
    %v376 = vpop.xlane.xlu0 %375
    %v377 = vsel %vm192, %v243, 0.0
    %378 = vadd.xlane.f32.xlu0 %v377
    %v379 = vpop.xlane.xlu0 %378
    %v380 = vsel %vm192, %v244, 0.0
    %381 = vadd.xlane.f32.xlu0 %v380
    %v382 = vpop.xlane.xlu0 %381
    %v383 = vsel %vm192, %v245, 0.0
    %384 = vadd.xlane.f32.xlu0 %v383
    %v385 = vpop.xlane.xlu0 %384
    %v386 = vsel %vm192, %v246, 0.0
    %387 = vadd.xlane.f32.xlu0 %v386
    %v388 = vpop.xlane.xlu0 %387
    %v389 = vsel %vm192, %v247, 0.0
    %390 = vadd.xlane.f32.xlu0 %v389
    %v391 = vpop.xlane.xlu0 %390
    %v392 = vsel %vm192, %v248, 0.0
    %393 = vadd.xlane.f32.xlu0 %v392
    %v394 = vpop.xlane.xlu0 %393
    %v395 = vsel %vm192, %v249, 0.0
    %396 = vadd.xlane.f32.xlu0 %v395
    %v397 = vpop.xlane.xlu0 %396
    %v398 = vsel %vm192, %v250, 0.0
    %399 = vadd.xlane.f32.xlu0 %v398
    %v400 = vpop.xlane.xlu0 %399
    %v401 = vsel %vm192, %v251, 0.0
    %402 = vadd.xlane.f32.xlu0 %v401
    %v403 = vpop.xlane.xlu0 %402
    %v404 = vsel %vm192, %v252, 0.0
    %405 = vadd.xlane.f32.xlu0 %v404
    %v406 = vpop.xlane.xlu0 %405
    %v407 = vsel %vm192, %v253, 0.0
    %408 = vadd.xlane.f32.xlu0 %v407
    %v409 = vpop.xlane.xlu0 %408
    %v410 = vsel %vm192, %v254, 0.0
    %411 = vadd.xlane.f32.xlu0 %v410
    %v412 = vpop.xlane.xlu0 %411
    %v413 = vsel %vm192, %v255, 0.0
    %414 = vadd.xlane.f32.xlu0 %v413
    %v415 = vpop.xlane.xlu0 %414
    %v416 = vsel %vm192, %v256, 0.0
    %417 = vadd.xlane.f32.xlu0 %v416
    %v418 = vpop.xlane.xlu0 %417
    %v419 = vsel %vm192, %v257, 0.0
    %420 = vadd.xlane.f32.xlu0 %v419
    %v421 = vpop.xlane.xlu0 %420
    %v422 = vsel %vm192, %v258, 0.0
    %423 = vadd.xlane.f32.xlu0 %v422
    %v424 = vpop.xlane.xlu0 %423
    %v425 = vsel %vm192, %v259, 0.0
    %426 = vadd.xlane.f32.xlu0 %v425
    %v427 = vpop.xlane.xlu0 %426
    %v428 = vsel %vm192, %v260, 0.0
    %429 = vadd.xlane.f32.xlu0 %v428
    %v430 = vpop.xlane.xlu0 %429
    %v431 = vsel %vm192, %v261, 0.0
    %432 = vadd.xlane.f32.xlu0 %v431
    %v433 = vpop.xlane.xlu0 %432
    %v434 = vsel %vm192, %v262, 0.0
    %435 = vadd.xlane.f32.xlu0 %v434
    %v436 = vpop.xlane.xlu0 %435
    %v437 = vsel %vm192, %v263, 0.0
    %438 = vadd.xlane.f32.xlu0 %v437
    %v439 = vpop.xlane.xlu0 %438
    %v440 = vsel %vm192, %v264, 0.0
    %441 = vadd.xlane.f32.xlu0 %v440
    %v442 = vpop.xlane.xlu0 %441
    %v443 = vsel %vm192, %v265, 0.0
    %444 = vadd.xlane.f32.xlu0 %v443
    %v445 = vpop.xlane.xlu0 %444
    %v446 = vsel %vm192, %v266, 0.0
    %447 = vadd.xlane.f32.xlu0 %v446
    %v448 = vpop.xlane.xlu0 %447
    %v449 = vsel %vm192, %v267, 0.0
    %450 = vadd.xlane.f32.xlu0 %v449
    %v451 = vpop.xlane.xlu0 %450
    %v452 = vsel %vm192, %v268, 0.0
    %453 = vadd.xlane.f32.xlu0 %v452
    %v454 = vpop.xlane.xlu0 %453
    %v455 = vsel %vm192, %v269, 0.0
    %456 = vadd.xlane.f32.xlu0 %v455
    %v457 = vpop.xlane.xlu0 %456
    %v458 = vsel %vm192, %v270, 0.0
    %459 = vadd.xlane.f32.xlu0 %v458
    %v460 = vpop.xlane.xlu0 %459
    %v461 = vsel %vm192, %v271, 0.0
    %462 = vadd.xlane.f32.xlu0 %v461
    %v463 = vpop.xlane.xlu0 %462
    %v464 = vsel %vm192, %v272, 0.0
    %465 = vadd.xlane.f32.xlu0 %v464
    %v466 = vpop.xlane.xlu0 %465
    %v467 = vsel %vm192, %v273, 0.0
    %468 = vadd.xlane.f32.xlu0 %v467
    %v469 = vpop.xlane.xlu0 %468
    %v470 = vsel %vm192, %v274, 0.0
    %471 = vadd.xlane.f32.xlu0 %v470
    %v472 = vpop.xlane.xlu0 %471
    %v473 = vsel %vm192, %v275, 0.0
    %474 = vadd.xlane.f32.xlu0 %v473
    %v475 = vpop.xlane.xlu0 %474
    %v476 = vsel %vm192, %v276, 0.0
    %477 = vadd.xlane.f32.xlu0 %v476
    %v478 = vpop.xlane.xlu0 %477
    %v479 = vsel %vm192, %v277, 0.0
    %480 = vadd.xlane.f32.xlu0 %v479
    %v481 = vpop.xlane.xlu0 %480
    %v482 = vsel %vm192, %v278, 0.0
    %483 = vadd.xlane.f32.xlu0 %v482
    %v484 = vpop.xlane.xlu0 %483
    %v485 = vsel %vm192, %v279, 0.0
    %486 = vadd.xlane.f32.xlu0 %v485
    %v487 = vpop.xlane.xlu0 %486
    %v488 = vsel %vm192, %v280, 0.0
    %489 = vadd.xlane.f32.xlu0 %v488
    %v490 = vpop.xlane.xlu0 %489
    %v491 = vsel %vm192, %v281, 0.0
    %492 = vadd.xlane.f32.xlu0 %v491
    %v493 = vpop.xlane.xlu0 %492
    %v494 = vsel %vm192, %v282, 0.0
    %495 = vadd.xlane.f32.xlu0 %v494
    %v496 = vpop.xlane.xlu0 %495
    %v497 = vsel %vm192, %v283, 0.0
    %498 = vadd.xlane.f32.xlu0 %v497
    %v499 = vpop.xlane.xlu0 %498
    %v500 = vsel %vm192, %v284, 0.0
    %501 = vadd.xlane.f32.xlu0 %v500
    %v502 = vpop.xlane.xlu0 %501
    %v503 = vsel %vm192, %v285, 0.0
    %504 = vadd.xlane.f32.xlu0 %v503
    %v505 = vpop.xlane.xlu0 %504
    %v506 = vsel %vm192, %v286, 0.0
    %507 = vadd.xlane.f32.xlu0 %v506
    %v508 = vpop.xlane.xlu0 %507
    %v509 = vsel %vm192, %v287, 0.0
    %510 = vadd.xlane.f32.xlu0 %v509
    %v511 = vpop.xlane.xlu0 %510
    %v512 = vsel %vm192, %v288, 0.0
    %513 = vadd.xlane.f32.xlu0 %v512
    %v514 = vpop.xlane.xlu0 %513
    %v515 = vsel %vm192, %v289, 0.0
    %516 = vadd.xlane.f32.xlu0 %v515
    %v517 = vpop.xlane.xlu0 %516
    %v518 = vsel %vm192, %v290, 0.0
    %519 = vadd.xlane.f32.xlu0 %v518
    %v520 = vpop.xlane.xlu0 %519
    %v521 = vsel %vm192, %v291, 0.0
    %522 = vadd.xlane.f32.xlu0 %v521
    %v523 = vpop.xlane.xlu0 %522
    %v524 = vsel %vm192, %v292, 0.0
    %525 = vadd.xlane.f32.xlu0 %v524
    %v526 = vpop.xlane.xlu0 %525
    %v527 = vsel %vm192, %v293, 0.0
    %528 = vadd.xlane.f32.xlu0 %v527
    %v529 = vpop.xlane.xlu0 %528
    %v530 = vsel %vm192, %v294, 0.0
    %531 = vadd.xlane.f32.xlu0 %v530
    %v532 = vpop.xlane.xlu0 %531
    %v533 = vsel %vm192, %v295, 0.0
    %534 = vadd.xlane.f32.xlu0 %v533
    %v535 = vpop.xlane.xlu0 %534
    %v536 = vsel %vm192, %v296, 0.0
    %537 = vadd.xlane.f32.xlu0 %v536
    %v538 = vpop.xlane.xlu0 %537
    %v539 = vsel %vm192, %v297, 0.0
    %540 = vadd.xlane.f32.xlu0 %v539
    %v541 = vpop.xlane.xlu0 %540
    %v542 = vsel %vm192, %v298, 0.0
    %543 = vadd.xlane.f32.xlu0 %v542
    %v544 = vpop.xlane.xlu0 %543
    %v545 = vsel %vm192, %v299, 0.0
    %546 = vadd.xlane.f32.xlu0 %v545
    %v547 = vpop.xlane.xlu0 %546
    %v548 = vsel %vm192, %v300, 0.0
    %549 = vadd.xlane.f32.xlu0 %v548
    %v550 = vpop.xlane.xlu0 %549
    %v551 = vsel %vm192, %v301, 0.0
    %552 = vadd.xlane.f32.xlu0 %v551
    %v553 = vpop.xlane.xlu0 %552
    %v554 = vsel %vm192, %v302, 0.0
    %555 = vadd.xlane.f32.xlu0 %v554
    %v556 = vpop.xlane.xlu0 %555
    %v557 = vsel %vm192, %v303, 0.0
    %558 = vadd.xlane.f32.xlu0 %v557
    %v559 = vpop.xlane.xlu0 %558
    %v560 = vsel %vm192, %v304, 0.0
    %561 = vadd.xlane.f32.xlu0 %v560
    %v562 = vpop.xlane.xlu0 %561
    %v563 = vsel %vm192, %v305, 0.0
    %564 = vadd.xlane.f32.xlu0 %v563
    %v565 = vpop.xlane.xlu0 %564
    %v566 = vsel %vm192, %v306, 0.0
    %567 = vadd.xlane.f32.xlu0 %v566
    %v568 = vpop.xlane.xlu0 %567
    %v569 = vsel %vm192, %v307, 0.0
    %570 = vadd.xlane.f32.xlu0 %v569
    %v571 = vpop.xlane.xlu0 %570
    %v572 = vsel %vm192, %v308, 0.0
    %573 = vadd.xlane.f32.xlu0 %v572
    %v574 = vpop.xlane.xlu0 %573
    %v575 = vsel %vm192, %v309, 0.0
    %576 = vadd.xlane.f32.xlu0 %v575
    %v577 = vpop.xlane.xlu0 %576
    %v578 = vsel %vm192, %v310, 0.0
    %579 = vadd.xlane.f32.xlu0 %v578
    %v580 = vpop.xlane.xlu0 %579
    %v581 = vsel %vm192, %v311, 0.0
    %582 = vadd.xlane.f32.xlu0 %v581
    %v583 = vpop.xlane.xlu0 %582
    %v584 = vsel %vm192, %v312, 0.0
    %585 = vadd.xlane.f32.xlu0 %v584
    %v586 = vpop.xlane.xlu0 %585
    %v587 = vsel %vm192, %v313, 0.0
    %588 = vadd.xlane.f32.xlu0 %v587
    %v589 = vpop.xlane.xlu0 %588
    %v590 = vsel %vm192, %v314, 0.0
    %591 = vadd.xlane.f32.xlu0 %v590
    %v592 = vpop.xlane.xlu0 %591
    %v593 = vsel %vm192, %v315, 0.0
    %594 = vadd.xlane.f32.xlu0 %v593
    %v595 = vpop.xlane.xlu0 %594
    %v596 = vsel %vm192, %v316, 0.0
    %597 = vadd.xlane.f32.xlu0 %v596
    %v598 = vpop.xlane.xlu0 %597
    %v599 = vsel %vm192, %v317, 0.0
    %600 = vadd.xlane.f32.xlu0 %v599
    %v601 = vpop.xlane.xlu0 %600
    %v602 = vsel %vm192, %v318, 0.0
    %603 = vadd.xlane.f32.xlu0 %v602
    %v604 = vpop.xlane.xlu0 %603
    %v605 = vsel %vm192, %v319, 0.0
    %606 = vadd.xlane.f32.xlu0 %v605
    %v607 = vpop.xlane.xlu0 %606
    %v608 = vsel %vm192, %v320, 0.0
    %609 = vadd.xlane.f32.xlu0 %v608
    %v610 = vpop.xlane.xlu0 %609
    %v611 = vsel %vm192, %v321, 0.0
    %612 = vadd.xlane.f32.xlu0 %v611
    %v613 = vpop.xlane.xlu0 %612
    %v614 = vsel %vm192, %v322, 0.0
    %615 = vadd.xlane.f32.xlu0 %v614
    %v616 = vpop.xlane.xlu0 %615
    %v617 = vsel %vm192, %v323, 0.0
    %618 = vadd.xlane.f32.xlu0 %v617
    %v619 = vpop.xlane.xlu0 %618
    %v620 = vsel %vm192, %v324, 0.0
    %621 = vadd.xlane.f32.xlu0 %v620
    %v622 = vpop.xlane.xlu0 %621
    %v623 = vsel %vm192, %v325, 0.0
    %624 = vadd.xlane.f32.xlu0 %v623
    %v625 = vpop.xlane.xlu0 %624
    %v626 = vsel %vm192, %v326, 0.0
    %627 = vadd.xlane.f32.xlu0 %v626
    %v628 = vpop.xlane.xlu0 %627
    %v629 = vsel %vm192, %v327, 0.0
    %630 = vadd.xlane.f32.xlu0 %v629
    %v631 = vpop.xlane.xlu0 %630
    %v632 = vsel %vm192, %v328, 0.0
    %633 = vadd.xlane.f32.xlu0 %v632
    %v634 = vpop.xlane.xlu0 %633
    %v635 = vsel %vm192, %v329, 0.0
    %636 = vadd.xlane.f32.xlu0 %v635
    %v637 = vpop.xlane.xlu0 %636
    %v638 = vsel %vm192, %v330, 0.0
    %639 = vadd.xlane.f32.xlu0 %v638
    %v640 = vpop.xlane.xlu0 %639
    %v641 = vsel %vm192, %v331, 0.0
    %642 = vadd.xlane.f32.xlu0 %v641
    %v643 = vpop.xlane.xlu0 %642
    %v644 = vsel %vm192, %v332, 0.0
    %645 = vadd.xlane.f32.xlu0 %v644
    %v646 = vpop.xlane.xlu0 %645
    %v647 = vsel %vm192, %v333, 0.0
    %648 = vadd.xlane.f32.xlu0 %v647
    %v649 = vpop.xlane.xlu0 %648
    %v650 = vsel %vm192, %v334, 0.0
    %651 = vadd.xlane.f32.xlu0 %v650
    %v652 = vpop.xlane.xlu0 %651
    %v653 = vsel %vm192, %v335, 0.0
    %654 = vadd.xlane.f32.xlu0 %v653
    %v655 = vpop.xlane.xlu0 %654
    %v656 = vsel %vm192, %v336, 0.0
    %657 = vadd.xlane.f32.xlu0 %v656
    %v658 = vpop.xlane.xlu0 %657
    %v659 = vsel %vm192, %v337, 0.0
    %660 = vadd.xlane.f32.xlu0 %v659
    %v661 = vpop.xlane.xlu0 %660
    %v662 = vsel %vm192, %v338, 0.0
    %663 = vadd.xlane.f32.xlu0 %v662
    %v664 = vpop.xlane.xlu0 %663
    %v665 = vsel %vm192, %v339, 0.0
    %666 = vadd.xlane.f32.xlu0 %v665
    %v667 = vpop.xlane.xlu0 %666
    %v668 = vsel %vm192, %v340, 0.0
    %669 = vadd.xlane.f32.xlu0 %v668
    %v670 = vpop.xlane.xlu0 %669
    %v671 = vsel %vm192, %v341, 0.0
    %672 = vadd.xlane.f32.xlu0 %v671
    %v673 = vpop.xlane.xlu0 %672
    %v674 = vsel %vm192, %v342, 0.0
    %675 = vadd.xlane.f32.xlu0 %v674
    %v676 = vpop.xlane.xlu0 %675
    %v677 = vsel %vm192, %v343, 0.0
    %678 = vadd.xlane.f32.xlu0 %v677
    %v679 = vpop.xlane.xlu0 %678
    %v680 = vsel %vm192, %v344, 0.0
    %681 = vadd.xlane.f32.xlu0 %v680
    %v682 = vpop.xlane.xlu0 %681
    %v683 = vsel %vm192, %v345, 0.0
    %684 = vadd.xlane.f32.xlu0 %v683
    %v685 = vpop.xlane.xlu0 %684
    %v686 = vsel %vm192, %v346, 0.0
    %687 = vadd.xlane.f32.xlu0 %v686
    %v688 = vpop.xlane.xlu0 %687
    %v689 = vsel %vm192, %v347, 0.0
    %690 = vadd.xlane.f32.xlu0 %v689
    %v691 = vpop.xlane.xlu0 %690
    %v692 = vsel %vm192, %v348, 0.0
    %693 = vadd.xlane.f32.xlu0 %v692
    %v694 = vpop.xlane.xlu0 %693
    %v695 = vsel %vm192, %v349, 0.0
    %696 = vadd.xlane.f32.xlu0 %v695
    %v697 = vpop.xlane.xlu0 %696
    %v698 = vsel %vm192, %v350, 0.0
    %699 = vadd.xlane.f32.xlu0 %v698
    %v700 = vpop.xlane.xlu0 %699
    %v701 = vsel %vm192, %v351, 0.0
    %702 = vadd.xlane.f32.xlu0 %v701
    %v703 = vpop.xlane.xlu0 %702
    %v704 = vsel %vm192, %v352, 0.0
    %705 = vadd.xlane.f32.xlu0 %v704
    %v706 = vpop.xlane.xlu0 %705
    %v707 = vsel %vm192, %v353, 0.0
    %708 = vadd.xlane.f32.xlu0 %v707
    %v709 = vpop.xlane.xlu0 %708
    %v710 = vsel %vm192, %v354, 0.0
    %711 = vadd.xlane.f32.xlu0 %v710
    %v712 = vpop.xlane.xlu0 %711
    %v713 = vsel %vm192, %v355, 0.0
    %714 = vadd.xlane.f32.xlu0 %v713
    %v715 = vpop.xlane.xlu0 %714
    %v716 = vsel %vm192, %v356, 0.0
    %717 = vadd.xlane.f32.xlu0 %v716
    %v718 = vpop.xlane.xlu0 %717
    %v719 = vsel %vm192, %v357, 0.0
    %720 = vadd.xlane.f32.xlu0 %v719
    %v721 = vpop.xlane.xlu0 %720
    %v722 = vsel %vm192, %v358, 0.0
    %723 = vadd.xlane.f32.xlu0 %v722
    %v724 = vpop.xlane.xlu0 %723
    %v725 = vsel %vm192, %v359, 0.0
    %726 = vadd.xlane.f32.xlu0 %v725
    %v727 = vpop.xlane.xlu0 %726
    %v728 = vsel %vm192, %v360, 0.0
    %729 = vadd.xlane.f32.xlu0 %v728
    %v730 = vpop.xlane.xlu0 %729
    %v731 = vsel %vm192, %v361, 0.0
    %732 = vadd.xlane.f32.xlu0 %v731
    %v733 = vpop.xlane.xlu0 %732
    %v734 = vsel %vm192, %v362, 0.0
    %735 = vadd.xlane.f32.xlu0 %v734
    %v736 = vpop.xlane.xlu0 %735
    %v737 = vsel %vm192, %v363, 0.0
    %738 = vadd.xlane.f32.xlu0 %v737
    %v739 = vpop.xlane.xlu0 %738
    %v740 = vsel %vm192, %v364, 0.0
    %741 = vadd.xlane.f32.xlu0 %v740
    %v742 = vpop.xlane.xlu0 %741
    %v743 = vsel %vm192, %v365, 0.0
    %744 = vadd.xlane.f32.xlu0 %v743
    %v745 = vpop.xlane.xlu0 %744
    %v746 = vsel %vm192, %v366, 0.0
    %747 = vadd.xlane.f32.xlu0 %v746
    %v748 = vpop.xlane.xlu0 %747
    %v749 = vsel %vm192, %v367, 0.0
    %750 = vadd.xlane.f32.xlu0 %v749
    %v751 = vpop.xlane.xlu0 %750
    %vm752 = vcmp.gt.f32.partialorder %v183, 0.0
    %v881 = vlaneseq
    %v882 = vand.u32 %v881, 127
    %v883 = vperm.slane %v370, %v882
    %v884 = vadd.s32 %v882, 4294967288
    %v885 = vperm.slane %v373, %v884
    %vm886 = vcmask 130112
    %v887 = vsel %vm886, %v885, %v883
    %v888 = vadd.s32 %v882, 4294967280
    %v889 = vperm.slane %v376, %v888
    %vm890 = vcmask 195712
    %v891 = vsel %vm890, %v889, %v887
    %v892 = vadd.s32 %v882, 4294967272
    %v893 = vperm.slane %v379, %v892
    %vm894 = vcmask 261312
    %v895 = vsel %vm894, %v893, %v891
    %v896 = vadd.s32 %v882, 4294967264
    %v897 = vperm.slane %v382, %v896
    %vm898 = vcmask 326912
    %v899 = vsel %vm898, %v897, %v895
    %v900 = vadd.s32 %v882, 4294967256
    %v901 = vperm.slane %v385, %v900
    %vm902 = vcmask 392512
    %v903 = vsel %vm902, %v901, %v899
    %v904 = vadd.s32 %v882, 4294967248
    %v905 = vperm.slane %v388, %v904
    %vm906 = vcmask 458112
    %v907 = vsel %vm906, %v905, %v903
    %v908 = vadd.s32 %v882, 4294967240
    %v909 = vperm.slane %v391, %v908
    %vm910 = vcmask 523712
    %v911 = vsel %vm910, %v909, %v907
    %v912 = vadd.s32 %v882, 4294967232
    %v913 = vperm.slane %v394, %v912
    %vm914 = vcmask 589312
    %v915 = vsel %vm914, %v913, %v911
    %v916 = vadd.s32 %v882, 4294967224
    %v917 = vperm.slane %v397, %v916
    %vm918 = vcmask 654912
    %v919 = vsel %vm918, %v917, %v915
    %v920 = vadd.s32 %v882, 4294967216
    %v921 = vperm.slane %v400, %v920
    %vm922 = vcmask 720512
    %v923 = vsel %vm922, %v921, %v919
    %v924 = vadd.s32 %v882, 4294967208
    %v925 = vperm.slane %v403, %v924
    %vm926 = vcmask 786112
    %v927 = vsel %vm926, %v925, %v923
    %v928 = vadd.s32 %v882, 4294967200
    %v929 = vperm.slane %v406, %v928
    %vm930 = vcmask 851712
    %v931 = vsel %vm930, %v929, %v927
    %v932 = vadd.s32 %v882, 4294967192
    %v933 = vperm.slane %v409, %v932
    %vm934 = vcmask 917312
    %v935 = vsel %vm934, %v933, %v931
    %v936 = vadd.s32 %v882, 4294967184
    %v937 = vperm.slane %v412, %v936
    %vm938 = vcmask 982912
    %v939 = vsel %vm938, %v937, %v935
    %v940 = vadd.s32 %v882, 4294967176
    %v941 = vperm.slane %v415, %v940
    %vm942 = vcmask 1048512
    %v943 = vsel %vm942, %v941, %v939
    %v944 = vperm.slane %v418, %v882
    %v945 = vperm.slane %v421, %v884
    %v946 = vsel %vm886, %v945, %v944
    %v947 = vperm.slane %v424, %v888
    %v948 = vsel %vm890, %v947, %v946
    %v949 = vperm.slane %v427, %v892
    %v950 = vsel %vm894, %v949, %v948
    %v951 = vperm.slane %v430, %v896
    %v952 = vsel %vm898, %v951, %v950
    %v953 = vperm.slane %v433, %v900
    %v954 = vsel %vm902, %v953, %v952
    %v955 = vperm.slane %v436, %v904
    %v956 = vsel %vm906, %v955, %v954
    %v957 = vperm.slane %v439, %v908
    %v958 = vsel %vm910, %v957, %v956
    %v959 = vperm.slane %v442, %v912
    %v960 = vsel %vm914, %v959, %v958
    %v961 = vperm.slane %v445, %v916
    %v962 = vsel %vm918, %v961, %v960
    %v963 = vperm.slane %v448, %v920
    %v964 = vsel %vm922, %v963, %v962
    %v965 = vperm.slane %v451, %v924
    %v966 = vsel %vm926, %v965, %v964
    %v967 = vperm.slane %v454, %v928
    %v968 = vsel %vm930, %v967, %v966
    %v969 = vperm.slane %v457, %v932
    %v970 = vsel %vm934, %v969, %v968
    %v971 = vperm.slane %v460, %v936
    %v972 = vsel %vm938, %v971, %v970
    %v973 = vperm.slane %v463, %v940
    %v974 = vsel %vm942, %v973, %v972
    %v975 = vperm.slane %v466, %v882
    %v976 = vperm.slane %v469, %v884
    %v977 = vsel %vm886, %v976, %v975
    %v978 = vperm.slane %v472, %v888
    %v979 = vsel %vm890, %v978, %v977
    %v980 = vperm.slane %v475, %v892
    %v981 = vsel %vm894, %v980, %v979
    %v982 = vperm.slane %v478, %v896
    %v983 = vsel %vm898, %v982, %v981
    %v984 = vperm.slane %v481, %v900
    %v985 = vsel %vm902, %v984, %v983
    %v986 = vperm.slane %v484, %v904
    %v987 = vsel %vm906, %v986, %v985
    %v988 = vperm.slane %v487, %v908
    %v989 = vsel %vm910, %v988, %v987
    %v990 = vperm.slane %v490, %v912
    %v991 = vsel %vm914, %v990, %v989
    %v992 = vperm.slane %v493, %v916
    %v993 = vsel %vm918, %v992, %v991
    %v994 = vperm.slane %v496, %v920
    %v995 = vsel %vm922, %v994, %v993
    %v996 = vperm.slane %v499, %v924
    %v997 = vsel %vm926, %v996, %v995
    %v998 = vperm.slane %v502, %v928
    %v999 = vsel %vm930, %v998, %v997
    %v1000 = vperm.slane %v505, %v932
    %v1001 = vsel %vm934, %v1000, %v999
    %v1002 = vperm.slane %v508, %v936
    %v1003 = vsel %vm938, %v1002, %v1001
    %v1004 = vperm.slane %v511, %v940
    %v1005 = vsel %vm942, %v1004, %v1003
    %v1006 = vperm.slane %v514, %v882
    %v1007 = vperm.slane %v517, %v884
    %v1008 = vsel %vm886, %v1007, %v1006
    %v1009 = vperm.slane %v520, %v888
    %v1010 = vsel %vm890, %v1009, %v1008
    %v1011 = vperm.slane %v523, %v892
    %v1012 = vsel %vm894, %v1011, %v1010
    %v1013 = vperm.slane %v526, %v896
    %v1014 = vsel %vm898, %v1013, %v1012
    %v1015 = vperm.slane %v529, %v900
    %v1016 = vsel %vm902, %v1015, %v1014
    %v1017 = vperm.slane %v532, %v904
    %v1018 = vsel %vm906, %v1017, %v1016
    %v1019 = vperm.slane %v535, %v908
    %v1020 = vsel %vm910, %v1019, %v1018
    %v1021 = vperm.slane %v538, %v912
    %v1022 = vsel %vm914, %v1021, %v1020
    %v1023 = vperm.slane %v541, %v916
    %v1024 = vsel %vm918, %v1023, %v1022
    %v1025 = vperm.slane %v544, %v920
    %v1026 = vsel %vm922, %v1025, %v1024
    %v1027 = vperm.slane %v547, %v924
    %v1028 = vsel %vm926, %v1027, %v1026
    %v1029 = vperm.slane %v550, %v928
    %v1030 = vsel %vm930, %v1029, %v1028
    %v1031 = vperm.slane %v553, %v932
    %v1032 = vsel %vm934, %v1031, %v1030
    %v1033 = vperm.slane %v556, %v936
    %v1034 = vsel %vm938, %v1033, %v1032
    %v1035 = vperm.slane %v559, %v940
    %v1036 = vsel %vm942, %v1035, %v1034
    %v1037 = vperm.slane %v562, %v882
    %v1038 = vperm.slane %v565, %v884
    %v1039 = vsel %vm886, %v1038, %v1037
    %v1040 = vperm.slane %v568, %v888
    %v1041 = vsel %vm890, %v1040, %v1039
    %v1042 = vperm.slane %v571, %v892
    %v1043 = vsel %vm894, %v1042, %v1041
    %v1044 = vperm.slane %v574, %v896
    %v1045 = vsel %vm898, %v1044, %v1043
    %v1046 = vperm.slane %v577, %v900
    %v1047 = vsel %vm902, %v1046, %v1045
    %v1048 = vperm.slane %v580, %v904
    %v1049 = vsel %vm906, %v1048, %v1047
    %v1050 = vperm.slane %v583, %v908
    %v1051 = vsel %vm910, %v1050, %v1049
    %v1052 = vperm.slane %v586, %v912
    %v1053 = vsel %vm914, %v1052, %v1051
    %v1054 = vperm.slane %v589, %v916
    %v1055 = vsel %vm918, %v1054, %v1053
    %v1056 = vperm.slane %v592, %v920
    %v1057 = vsel %vm922, %v1056, %v1055
    %v1058 = vperm.slane %v595, %v924
    %v1059 = vsel %vm926, %v1058, %v1057
    %v1060 = vperm.slane %v598, %v928
    %v1061 = vsel %vm930, %v1060, %v1059
    %v1062 = vperm.slane %v601, %v932
    %v1063 = vsel %vm934, %v1062, %v1061
    %v1064 = vperm.slane %v604, %v936
    %v1065 = vsel %vm938, %v1064, %v1063
    %v1066 = vperm.slane %v607, %v940
    %v1067 = vsel %vm942, %v1066, %v1065
    %v1068 = vperm.slane %v610, %v882
    %v1069 = vperm.slane %v613, %v884
    %v1070 = vsel %vm886, %v1069, %v1068
    %v1071 = vperm.slane %v616, %v888
    %v1072 = vsel %vm890, %v1071, %v1070
    %v1073 = vperm.slane %v619, %v892
    %v1074 = vsel %vm894, %v1073, %v1072
    %v1075 = vperm.slane %v622, %v896
    %v1076 = vsel %vm898, %v1075, %v1074
    %v1077 = vperm.slane %v625, %v900
    %v1078 = vsel %vm902, %v1077, %v1076
    %v1079 = vperm.slane %v628, %v904
    %v1080 = vsel %vm906, %v1079, %v1078
    %v1081 = vperm.slane %v631, %v908
    %v1082 = vsel %vm910, %v1081, %v1080
    %v1083 = vperm.slane %v634, %v912
    %v1084 = vsel %vm914, %v1083, %v1082
    %v1085 = vperm.slane %v637, %v916
    %v1086 = vsel %vm918, %v1085, %v1084
    %v1087 = vperm.slane %v640, %v920
    %v1088 = vsel %vm922, %v1087, %v1086
    %v1089 = vperm.slane %v643, %v924
    %v1090 = vsel %vm926, %v1089, %v1088
    %v1091 = vperm.slane %v646, %v928
    %v1092 = vsel %vm930, %v1091, %v1090
    %v1093 = vperm.slane %v649, %v932
    %v1094 = vsel %vm934, %v1093, %v1092
    %v1095 = vperm.slane %v652, %v936
    %v1096 = vsel %vm938, %v1095, %v1094
    %v1097 = vperm.slane %v655, %v940
    %v1098 = vsel %vm942, %v1097, %v1096
    %v1099 = vperm.slane %v658, %v882
    %v1100 = vperm.slane %v661, %v884
    %v1101 = vsel %vm886, %v1100, %v1099
    %v1102 = vperm.slane %v664, %v888
    %v1103 = vsel %vm890, %v1102, %v1101
    %v1104 = vperm.slane %v667, %v892
    %v1105 = vsel %vm894, %v1104, %v1103
    %v1106 = vperm.slane %v670, %v896
    %v1107 = vsel %vm898, %v1106, %v1105
    %v1108 = vperm.slane %v673, %v900
    %v1109 = vsel %vm902, %v1108, %v1107
    %v1110 = vperm.slane %v676, %v904
    %v1111 = vsel %vm906, %v1110, %v1109
    %v1112 = vperm.slane %v679, %v908
    %v1113 = vsel %vm910, %v1112, %v1111
    %v1114 = vperm.slane %v682, %v912
    %v1115 = vsel %vm914, %v1114, %v1113
    %v1116 = vperm.slane %v685, %v916
    %v1117 = vsel %vm918, %v1116, %v1115
    %v1118 = vperm.slane %v688, %v920
    %v1119 = vsel %vm922, %v1118, %v1117
    %v1120 = vperm.slane %v691, %v924
    %v1121 = vsel %vm926, %v1120, %v1119
    %v1122 = vperm.slane %v694, %v928
    %v1123 = vsel %vm930, %v1122, %v1121
    %v1124 = vperm.slane %v697, %v932
    %v1125 = vsel %vm934, %v1124, %v1123
    %v1126 = vperm.slane %v700, %v936
    %v1127 = vsel %vm938, %v1126, %v1125
    %v1128 = vperm.slane %v703, %v940
    %v1129 = vsel %vm942, %v1128, %v1127
    %v1130 = vperm.slane %v706, %v882
    %v1131 = vperm.slane %v709, %v884
    %v1132 = vsel %vm886, %v1131, %v1130
    %v1133 = vperm.slane %v712, %v888
    %v1134 = vsel %vm890, %v1133, %v1132
    %v1135 = vperm.slane %v715, %v892
    %v1136 = vsel %vm894, %v1135, %v1134
    %v1137 = vperm.slane %v718, %v896
    %v1138 = vsel %vm898, %v1137, %v1136
    %v1139 = vperm.slane %v721, %v900
    %v1140 = vsel %vm902, %v1139, %v1138
    %v1141 = vperm.slane %v724, %v904
    %v1142 = vsel %vm906, %v1141, %v1140
    %v1143 = vperm.slane %v727, %v908
    %v1144 = vsel %vm910, %v1143, %v1142
    %v1145 = vperm.slane %v730, %v912
    %v1146 = vsel %vm914, %v1145, %v1144
    %v1147 = vperm.slane %v733, %v916
    %v1148 = vsel %vm918, %v1147, %v1146
    %v1149 = vperm.slane %v736, %v920
    %v1150 = vsel %vm922, %v1149, %v1148
    %v1151 = vperm.slane %v739, %v924
    %v1152 = vsel %vm926, %v1151, %v1150
    %v1153 = vperm.slane %v742, %v928
    %v1154 = vsel %vm930, %v1153, %v1152
    %v1155 = vperm.slane %v745, %v932
    %v1156 = vsel %vm934, %v1155, %v1154
    %v1157 = vperm.slane %v748, %v936
    %v1158 = vsel %vm938, %v1157, %v1156
    %v1159 = vperm.slane %v751, %v940
    %v1160 = vsel %vm942, %v1159, %v1158
    %vm1161 = vcmask 1041409
    %v1162 = vsel %vm1161, %v974, %v943
    %vm1163 = vcmask 1042434
    %v1164 = vsel %vm1163, %v1005, %v1162
    %vm1165 = vcmask 1043459
    %v1166 = vsel %vm1165, %v1036, %v1164
    %vm1167 = vcmask 1044484
    %v1168 = vsel %vm1167, %v1067, %v1166
    %vm1169 = vcmask 1045509
    %v1170 = vsel %vm1169, %v1098, %v1168
    %vm1171 = vcmask 1046534
    %v1172 = vsel %vm1171, %v1129, %v1170
    %vm1173 = vcmask 1047559
    %v1174 = vsel %vm1173, %v1160, %v1172
    %v1176 = vsel %vm752, -inf, %v1174
    %1177 = vst [vmem:[#allocation2] sm:$0xff] %v1176
    %1178 = vmax.xlane.f32.xlu0 %v1176
    %v1179 = vpop.xlane.xlu0 %1178
    %v1180 = vsub.f32 %v1176, %v1179
    %v1181 = vmul.f32 %v1180, 1.442695
    %v1182 = vpow.pop %v1181
    %1183 = vadd.xlane.f32.xlu0 %v1182
    %v1184 = vpop.xlane.xlu0 %1183
    %v1185 = vrcp.pop %v1184
    %v1186 = vmul.f32 %v1184, %v1185
    %v1187 = vsub.f32 1.0, %v1186
    %v1188 = vmul.f32 %v1185, %v1187
    %v1189 = vadd.f32 %v1185, %v1188
    %vm1190 = vweird.f32 %v1184
    %vm1191 = vweird.f32 %v1185
    %vm1192 = vmor %vm1190, %vm1191
    %v1193 = vsel %vm1192, %v1185, %v1189
    %v1194 = vand.u32 2147483647, %v1184
    %vm1195 = vcmp.eq.f32.partialorder %v1194, 8.507059e+37
    %v1196 = vand.u32 %v1184, 2147483648
    %v1197 = vor.u32 1.1754944e-38, %v1196
    %v1198 = vsel %vm1195, %v1197, %v1193
    %v1199 = vmul.f32 %v1182, %v1198
    %v1200 = vperm.slane %v1199, 0
    %v1201 = vlaneseq
    %v1202 = vshrl.u32 %v1201, 7
    %1204 = vset.pattern.permute.xlu0 %v1202
    %1205 = vperm.xlu0 %1204, %v1200
    %v1206 = vpop.permute.xlu0 %1205
    %v1207 = vlaneseq
    %v1208 = vshrl.u32 %v1207, 7
    %v1209 = vadd.s32 %v1208, 8
    %1210 = vset.pattern.permute.xlu0 %v1209
    %1211 = vperm.xlu0 %1210, %v1200
    %v1212 = vpop.permute.xlu0 %1211
    %v1213 = vlaneseq
    %v1214 = vshrl.u32 %v1213, 7
    %v1215 = vadd.s32 %v1214, 16
    %1216 = vset.pattern.permute.xlu0 %v1215
    %1217 = vperm.xlu0 %1216, %v1200
    %v1218 = vpop.permute.xlu0 %1217
    %v1219 = vlaneseq
    %v1220 = vshrl.u32 %v1219, 7
    %v1221 = vadd.s32 %v1220, 24
    %1222 = vset.pattern.permute.xlu0 %v1221
    %1223 = vperm.xlu0 %1222, %v1200
    %v1224 = vpop.permute.xlu0 %1223
    %v1225 = vlaneseq
    %v1226 = vshrl.u32 %v1225, 7
    %v1227 = vadd.s32 %v1226, 32
    %1228 = vset.pattern.permute.xlu0 %v1227
    %1229 = vperm.xlu0 %1228, %v1200
    %v1230 = vpop.permute.xlu0 %1229
    %v1231 = vlaneseq
    %v1232 = vshrl.u32 %v1231, 7
    %v1233 = vadd.s32 %v1232, 40
    %1234 = vset.pattern.permute.xlu0 %v1233
    %1235 = vperm.xlu0 %1234, %v1200
    %v1236 = vpop.permute.xlu0 %1235
    %v1237 = vlaneseq
    %v1238 = vshrl.u32 %v1237, 7
    %v1239 = vadd.s32 %v1238, 48
    %1240 = vset.pattern.permute.xlu0 %v1239
    %1241 = vperm.xlu0 %1240, %v1200
    %v1242 = vpop.permute.xlu0 %1241
    %v1243 = vlaneseq
    %v1244 = vshrl.u32 %v1243, 7
    %v1245 = vadd.s32 %v1244, 56
    %1246 = vset.pattern.permute.xlu0 %v1245
    %1247 = vperm.xlu0 %1246, %v1200
    %v1248 = vpop.permute.xlu0 %1247
    %v1249 = vlaneseq
    %v1250 = vshrl.u32 %v1249, 7
    %v1251 = vadd.s32 %v1250, 64
    %1252 = vset.pattern.permute.xlu0 %v1251
    %1253 = vperm.xlu0 %1252, %v1200
    %v1254 = vpop.permute.xlu0 %1253
    %v1255 = vlaneseq
    %v1256 = vshrl.u32 %v1255, 7
    %v1257 = vadd.s32 %v1256, 72
    %1258 = vset.pattern.permute.xlu0 %v1257
    %1259 = vperm.xlu0 %1258, %v1200
    %v1260 = vpop.permute.xlu0 %1259
    %v1261 = vlaneseq
    %v1262 = vshrl.u32 %v1261, 7
    %v1263 = vadd.s32 %v1262, 80
    %1264 = vset.pattern.permute.xlu0 %v1263
    %1265 = vperm.xlu0 %1264, %v1200
    %v1266 = vpop.permute.xlu0 %1265
    %v1267 = vlaneseq
    %v1268 = vshrl.u32 %v1267, 7
    %v1269 = vadd.s32 %v1268, 88
    %1270 = vset.pattern.permute.xlu0 %v1269
    %1271 = vperm.xlu0 %1270, %v1200
    %v1272 = vpop.permute.xlu0 %1271
    %v1273 = vlaneseq
    %v1274 = vshrl.u32 %v1273, 7
    %v1275 = vadd.s32 %v1274, 96
    %1276 = vset.pattern.permute.xlu0 %v1275
    %1277 = vperm.xlu0 %1276, %v1200
    %v1278 = vpop.permute.xlu0 %1277
    %v1279 = vlaneseq
    %v1280 = vshrl.u32 %v1279, 7
    %v1281 = vadd.s32 %v1280, 104
    %1282 = vset.pattern.permute.xlu0 %v1281
    %1283 = vperm.xlu0 %1282, %v1200
    %v1284 = vpop.permute.xlu0 %1283
    %v1285 = vlaneseq
    %v1286 = vshrl.u32 %v1285, 7
    %v1287 = vadd.s32 %v1286, 112
    %1288 = vset.pattern.permute.xlu0 %v1287
    %1289 = vperm.xlu0 %1288, %v1200
    %v1290 = vpop.permute.xlu0 %1289
    %v1291 = vlaneseq
    %v1292 = vshrl.u32 %v1291, 7
    %v1293 = vadd.s32 %v1292, 120
    %1294 = vset.pattern.permute.xlu0 %v1293
    %1295 = vperm.xlu0 %1294, %v1200
    %v1296 = vpop.permute.xlu0 %1295
    %v1297 = vperm.slane %v1199, 1
    %v1298 = vlaneseq
    %v1299 = vshrl.u32 %v1298, 7
    %1301 = vset.pattern.permute.xlu0 %v1299
    %1302 = vperm.xlu0 %1301, %v1297
    %v1303 = vpop.permute.xlu0 %1302
    %v1304 = vlaneseq
    %v1305 = vshrl.u32 %v1304, 7
    %v1306 = vadd.s32 %v1305, 8
    %1307 = vset.pattern.permute.xlu0 %v1306
    %1308 = vperm.xlu0 %1307, %v1297
    %v1309 = vpop.permute.xlu0 %1308
    %v1310 = vlaneseq
    %v1311 = vshrl.u32 %v1310, 7
    %v1312 = vadd.s32 %v1311, 16
    %1313 = vset.pattern.permute.xlu0 %v1312
    %1314 = vperm.xlu0 %1313, %v1297
    %v1315 = vpop.permute.xlu0 %1314
    %v1316 = vlaneseq
    %v1317 = vshrl.u32 %v1316, 7
    %v1318 = vadd.s32 %v1317, 24
    %1319 = vset.pattern.permute.xlu0 %v1318
    %1320 = vperm.xlu0 %1319, %v1297
    %v1321 = vpop.permute.xlu0 %1320
    %v1322 = vlaneseq
    %v1323 = vshrl.u32 %v1322, 7
    %v1324 = vadd.s32 %v1323, 32
    %1325 = vset.pattern.permute.xlu0 %v1324
    %1326 = vperm.xlu0 %1325, %v1297
    %v1327 = vpop.permute.xlu0 %1326
    %v1328 = vlaneseq
    %v1329 = vshrl.u32 %v1328, 7
    %v1330 = vadd.s32 %v1329, 40
    %1331 = vset.pattern.permute.xlu0 %v1330
    %1332 = vperm.xlu0 %1331, %v1297
    %v1333 = vpop.permute.xlu0 %1332
    %v1334 = vlaneseq
    %v1335 = vshrl.u32 %v1334, 7
    %v1336 = vadd.s32 %v1335, 48
    %1337 = vset.pattern.permute.xlu0 %v1336
    %1338 = vperm.xlu0 %1337, %v1297
    %v1339 = vpop.permute.xlu0 %1338
    %v1340 = vlaneseq
    %v1341 = vshrl.u32 %v1340, 7
    %v1342 = vadd.s32 %v1341, 56
    %1343 = vset.pattern.permute.xlu0 %v1342
    %1344 = vperm.xlu0 %1343, %v1297
    %v1345 = vpop.permute.xlu0 %1344
    %v1346 = vlaneseq
    %v1347 = vshrl.u32 %v1346, 7
    %v1348 = vadd.s32 %v1347, 64
    %1349 = vset.pattern.permute.xlu0 %v1348
    %1350 = vperm.xlu0 %1349, %v1297
    %v1351 = vpop.permute.xlu0 %1350
    %v1352 = vlaneseq
    %v1353 = vshrl.u32 %v1352, 7
    %v1354 = vadd.s32 %v1353, 72
    %1355 = vset.pattern.permute.xlu0 %v1354
    %1356 = vperm.xlu0 %1355, %v1297
    %v1357 = vpop.permute.xlu0 %1356
    %v1358 = vlaneseq
    %v1359 = vshrl.u32 %v1358, 7
    %v1360 = vadd.s32 %v1359, 80
    %1361 = vset.pattern.permute.xlu0 %v1360
    %1362 = vperm.xlu0 %1361, %v1297
    %v1363 = vpop.permute.xlu0 %1362
    %v1364 = vlaneseq
    %v1365 = vshrl.u32 %v1364, 7
    %v1366 = vadd.s32 %v1365, 88
    %1367 = vset.pattern.permute.xlu0 %v1366
    %1368 = vperm.xlu0 %1367, %v1297
    %v1369 = vpop.permute.xlu0 %1368
    %v1370 = vlaneseq
    %v1371 = vshrl.u32 %v1370, 7
    %v1372 = vadd.s32 %v1371, 96
    %1373 = vset.pattern.permute.xlu0 %v1372
    %1374 = vperm.xlu0 %1373, %v1297
    %v1375 = vpop.permute.xlu0 %1374
    %v1376 = vlaneseq
    %v1377 = vshrl.u32 %v1376, 7
    %v1378 = vadd.s32 %v1377, 104
    %1379 = vset.pattern.permute.xlu0 %v1378
    %1380 = vperm.xlu0 %1379, %v1297
    %v1381 = vpop.permute.xlu0 %1380
    %v1382 = vlaneseq
    %v1383 = vshrl.u32 %v1382, 7
    %v1384 = vadd.s32 %v1383, 112
    %1385 = vset.pattern.permute.xlu0 %v1384
    %1386 = vperm.xlu0 %1385, %v1297
    %v1387 = vpop.permute.xlu0 %1386
    %v1388 = vlaneseq
    %v1389 = vshrl.u32 %v1388, 7
    %v1390 = vadd.s32 %v1389, 120
    %1391 = vset.pattern.permute.xlu0 %v1390
    %1392 = vperm.xlu0 %1391, %v1297
    %v1393 = vpop.permute.xlu0 %1392
    %v1394 = vperm.slane %v1199, 2
    %v1395 = vlaneseq
    %v1396 = vshrl.u32 %v1395, 7
    %1398 = vset.pattern.permute.xlu0 %v1396
    %1399 = vperm.xlu0 %1398, %v1394
    %v1400 = vpop.permute.xlu0 %1399
    %v1401 = vlaneseq
    %v1402 = vshrl.u32 %v1401, 7
    %v1403 = vadd.s32 %v1402, 8
    %1404 = vset.pattern.permute.xlu0 %v1403
    %1405 = vperm.xlu0 %1404, %v1394
    %v1406 = vpop.permute.xlu0 %1405
    %v1407 = vlaneseq
    %v1408 = vshrl.u32 %v1407, 7
    %v1409 = vadd.s32 %v1408, 16
    %1410 = vset.pattern.permute.xlu0 %v1409
    %1411 = vperm.xlu0 %1410, %v1394
    %v1412 = vpop.permute.xlu0 %1411
    %v1413 = vlaneseq
    %v1414 = vshrl.u32 %v1413, 7
    %v1415 = vadd.s32 %v1414, 24
    %1416 = vset.pattern.permute.xlu0 %v1415
    %1417 = vperm.xlu0 %1416, %v1394
    %v1418 = vpop.permute.xlu0 %1417
    %v1419 = vlaneseq
    %v1420 = vshrl.u32 %v1419, 7
    %v1421 = vadd.s32 %v1420, 32
    %1422 = vset.pattern.permute.xlu0 %v1421
    %1423 = vperm.xlu0 %1422, %v1394
    %v1424 = vpop.permute.xlu0 %1423
    %v1425 = vlaneseq
    %v1426 = vshrl.u32 %v1425, 7
    %v1427 = vadd.s32 %v1426, 40
    %1428 = vset.pattern.permute.xlu0 %v1427
    %1429 = vperm.xlu0 %1428, %v1394
    %v1430 = vpop.permute.xlu0 %1429
    %v1431 = vlaneseq
    %v1432 = vshrl.u32 %v1431, 7
    %v1433 = vadd.s32 %v1432, 48
    %1434 = vset.pattern.permute.xlu0 %v1433
    %1435 = vperm.xlu0 %1434, %v1394
    %v1436 = vpop.permute.xlu0 %1435
    %v1437 = vlaneseq
    %v1438 = vshrl.u32 %v1437, 7
    %v1439 = vadd.s32 %v1438, 56
    %1440 = vset.pattern.permute.xlu0 %v1439
    %1441 = vperm.xlu0 %1440, %v1394
    %v1442 = vpop.permute.xlu0 %1441
    %v1443 = vlaneseq
    %v1444 = vshrl.u32 %v1443, 7
    %v1445 = vadd.s32 %v1444, 64
    %1446 = vset.pattern.permute.xlu0 %v1445
    %1447 = vperm.xlu0 %1446, %v1394
    %v1448 = vpop.permute.xlu0 %1447
    %v1449 = vlaneseq
    %v1450 = vshrl.u32 %v1449, 7
    %v1451 = vadd.s32 %v1450, 72
    %1452 = vset.pattern.permute.xlu0 %v1451
    %1453 = vperm.xlu0 %1452, %v1394
    %v1454 = vpop.permute.xlu0 %1453
    %v1455 = vlaneseq
    %v1456 = vshrl.u32 %v1455, 7
    %v1457 = vadd.s32 %v1456, 80
    %1458 = vset.pattern.permute.xlu0 %v1457
    %1459 = vperm.xlu0 %1458, %v1394
    %v1460 = vpop.permute.xlu0 %1459
    %v1461 = vlaneseq
    %v1462 = vshrl.u32 %v1461, 7
    %v1463 = vadd.s32 %v1462, 88
    %1464 = vset.pattern.permute.xlu0 %v1463
    %1465 = vperm.xlu0 %1464, %v1394
    %v1466 = vpop.permute.xlu0 %1465
    %v1467 = vlaneseq
    %v1468 = vshrl.u32 %v1467, 7
    %v1469 = vadd.s32 %v1468, 96
    %1470 = vset.pattern.permute.xlu0 %v1469
    %1471 = vperm.xlu0 %1470, %v1394
    %v1472 = vpop.permute.xlu0 %1471
    %v1473 = vlaneseq
    %v1474 = vshrl.u32 %v1473, 7
    %v1475 = vadd.s32 %v1474, 104
    %1476 = vset.pattern.permute.xlu0 %v1475
    %1477 = vperm.xlu0 %1476, %v1394
    %v1478 = vpop.permute.xlu0 %1477
    %v1479 = vlaneseq
    %v1480 = vshrl.u32 %v1479, 7
    %v1481 = vadd.s32 %v1480, 112
    %1482 = vset.pattern.permute.xlu0 %v1481
    %1483 = vperm.xlu0 %1482, %v1394
    %v1484 = vpop.permute.xlu0 %1483
    %v1485 = vlaneseq
    %v1486 = vshrl.u32 %v1485, 7
    %v1487 = vadd.s32 %v1486, 120
    %1488 = vset.pattern.permute.xlu0 %v1487
    %1489 = vperm.xlu0 %1488, %v1394
    %v1490 = vpop.permute.xlu0 %1489
    %v1491 = vperm.slane %v1199, 3
    %v1492 = vlaneseq
    %v1493 = vshrl.u32 %v1492, 7
    %1495 = vset.pattern.permute.xlu0 %v1493
    %1496 = vperm.xlu0 %1495, %v1491
    %v1497 = vpop.permute.xlu0 %1496
    %v1498 = vlaneseq
    %v1499 = vshrl.u32 %v1498, 7
    %v1500 = vadd.s32 %v1499, 8
    %1501 = vset.pattern.permute.xlu0 %v1500
    %1502 = vperm.xlu0 %1501, %v1491
    %v1503 = vpop.permute.xlu0 %1502
    %v1504 = vlaneseq
    %v1505 = vshrl.u32 %v1504, 7
    %v1506 = vadd.s32 %v1505, 16
    %1507 = vset.pattern.permute.xlu0 %v1506
    %1508 = vperm.xlu0 %1507, %v1491
    %v1509 = vpop.permute.xlu0 %1508
    %v1510 = vlaneseq
    %v1511 = vshrl.u32 %v1510, 7
    %v1512 = vadd.s32 %v1511, 24
    %1513 = vset.pattern.permute.xlu0 %v1512
    %1514 = vperm.xlu0 %1513, %v1491
    %v1515 = vpop.permute.xlu0 %1514
    %v1516 = vlaneseq
    %v1517 = vshrl.u32 %v1516, 7
    %v1518 = vadd.s32 %v1517, 32
    %1519 = vset.pattern.permute.xlu0 %v1518
    %1520 = vperm.xlu0 %1519, %v1491
    %v1521 = vpop.permute.xlu0 %1520
    %v1522 = vlaneseq
    %v1523 = vshrl.u32 %v1522, 7
    %v1524 = vadd.s32 %v1523, 40
    %1525 = vset.pattern.permute.xlu0 %v1524
    %1526 = vperm.xlu0 %1525, %v1491
    %v1527 = vpop.permute.xlu0 %1526
    %v1528 = vlaneseq
    %v1529 = vshrl.u32 %v1528, 7
    %v1530 = vadd.s32 %v1529, 48
    %1531 = vset.pattern.permute.xlu0 %v1530
    %1532 = vperm.xlu0 %1531, %v1491
    %v1533 = vpop.permute.xlu0 %1532
    %v1534 = vlaneseq
    %v1535 = vshrl.u32 %v1534, 7
    %v1536 = vadd.s32 %v1535, 56
    %1537 = vset.pattern.permute.xlu0 %v1536
    %1538 = vperm.xlu0 %1537, %v1491
    %v1539 = vpop.permute.xlu0 %1538
    %v1540 = vlaneseq
    %v1541 = vshrl.u32 %v1540, 7
    %v1542 = vadd.s32 %v1541, 64
    %1543 = vset.pattern.permute.xlu0 %v1542
    %1544 = vperm.xlu0 %1543, %v1491
    %v1545 = vpop.permute.xlu0 %1544
    %v1546 = vlaneseq
    %v1547 = vshrl.u32 %v1546, 7
    %v1548 = vadd.s32 %v1547, 72
    %1549 = vset.pattern.permute.xlu0 %v1548
    %1550 = vperm.xlu0 %1549, %v1491
    %v1551 = vpop.permute.xlu0 %1550
    %v1552 = vlaneseq
    %v1553 = vshrl.u32 %v1552, 7
    %v1554 = vadd.s32 %v1553, 80
    %1555 = vset.pattern.permute.xlu0 %v1554
    %1556 = vperm.xlu0 %1555, %v1491
    %v1557 = vpop.permute.xlu0 %1556
    %v1558 = vlaneseq
    %v1559 = vshrl.u32 %v1558, 7
    %v1560 = vadd.s32 %v1559, 88
    %1561 = vset.pattern.permute.xlu0 %v1560
    %1562 = vperm.xlu0 %1561, %v1491
    %v1563 = vpop.permute.xlu0 %1562
    %v1564 = vlaneseq
    %v1565 = vshrl.u32 %v1564, 7
    %v1566 = vadd.s32 %v1565, 96
    %1567 = vset.pattern.permute.xlu0 %v1566
    %1568 = vperm.xlu0 %1567, %v1491
    %v1569 = vpop.permute.xlu0 %1568
    %v1570 = vlaneseq
    %v1571 = vshrl.u32 %v1570, 7
    %v1572 = vadd.s32 %v1571, 104
    %1573 = vset.pattern.permute.xlu0 %v1572
    %1574 = vperm.xlu0 %1573, %v1491
    %v1575 = vpop.permute.xlu0 %1574
    %v1576 = vlaneseq
    %v1577 = vshrl.u32 %v1576, 7
    %v1578 = vadd.s32 %v1577, 112
    %1579 = vset.pattern.permute.xlu0 %v1578
    %1580 = vperm.xlu0 %1579, %v1491
    %v1581 = vpop.permute.xlu0 %1580
    %v1582 = vlaneseq
    %v1583 = vshrl.u32 %v1582, 7
    %v1584 = vadd.s32 %v1583, 120
    %1585 = vset.pattern.permute.xlu0 %v1584
    %1586 = vperm.xlu0 %1585, %v1491
    %v1587 = vpop.permute.xlu0 %1586
    %v1588 = vperm.slane %v1199, 4
    %v1589 = vlaneseq
    %v1590 = vshrl.u32 %v1589, 7
    %1592 = vset.pattern.permute.xlu0 %v1590
    %1593 = vperm.xlu0 %1592, %v1588
    %v1594 = vpop.permute.xlu0 %1593
    %v1595 = vlaneseq
    %v1596 = vshrl.u32 %v1595, 7
    %v1597 = vadd.s32 %v1596, 8
    %1598 = vset.pattern.permute.xlu0 %v1597
    %1599 = vperm.xlu0 %1598, %v1588
    %v1600 = vpop.permute.xlu0 %1599
    %v1601 = vlaneseq
    %v1602 = vshrl.u32 %v1601, 7
    %v1603 = vadd.s32 %v1602, 16
    %1604 = vset.pattern.permute.xlu0 %v1603
    %1605 = vperm.xlu0 %1604, %v1588
    %v1606 = vpop.permute.xlu0 %1605
    %v1607 = vlaneseq
    %v1608 = vshrl.u32 %v1607, 7
    %v1609 = vadd.s32 %v1608, 24
    %1610 = vset.pattern.permute.xlu0 %v1609
    %1611 = vperm.xlu0 %1610, %v1588
    %v1612 = vpop.permute.xlu0 %1611
    %v1613 = vlaneseq
    %v1614 = vshrl.u32 %v1613, 7
    %v1615 = vadd.s32 %v1614, 32
    %1616 = vset.pattern.permute.xlu0 %v1615
    %1617 = vperm.xlu0 %1616, %v1588
    %v1618 = vpop.permute.xlu0 %1617
    %v1619 = vlaneseq
    %v1620 = vshrl.u32 %v1619, 7
    %v1621 = vadd.s32 %v1620, 40
    %1622 = vset.pattern.permute.xlu0 %v1621
    %1623 = vperm.xlu0 %1622, %v1588
    %v1624 = vpop.permute.xlu0 %1623
    %v1625 = vlaneseq
    %v1626 = vshrl.u32 %v1625, 7
    %v1627 = vadd.s32 %v1626, 48
    %1628 = vset.pattern.permute.xlu0 %v1627
    %1629 = vperm.xlu0 %1628, %v1588
    %v1630 = vpop.permute.xlu0 %1629
    %v1631 = vlaneseq
    %v1632 = vshrl.u32 %v1631, 7
    %v1633 = vadd.s32 %v1632, 56
    %1634 = vset.pattern.permute.xlu0 %v1633
    %1635 = vperm.xlu0 %1634, %v1588
    %v1636 = vpop.permute.xlu0 %1635
    %v1637 = vlaneseq
    %v1638 = vshrl.u32 %v1637, 7
    %v1639 = vadd.s32 %v1638, 64
    %1640 = vset.pattern.permute.xlu0 %v1639
    %1641 = vperm.xlu0 %1640, %v1588
    %v1642 = vpop.permute.xlu0 %1641
    %v1643 = vlaneseq
    %v1644 = vshrl.u32 %v1643, 7
    %v1645 = vadd.s32 %v1644, 72
    %1646 = vset.pattern.permute.xlu0 %v1645
    %1647 = vperm.xlu0 %1646, %v1588
    %v1648 = vpop.permute.xlu0 %1647
    %v1649 = vlaneseq
    %v1650 = vshrl.u32 %v1649, 7
    %v1651 = vadd.s32 %v1650, 80
    %1652 = vset.pattern.permute.xlu0 %v1651
    %1653 = vperm.xlu0 %1652, %v1588
    %v1654 = vpop.permute.xlu0 %1653
    %v1655 = vlaneseq
    %v1656 = vshrl.u32 %v1655, 7
    %v1657 = vadd.s32 %v1656, 88
    %1658 = vset.pattern.permute.xlu0 %v1657
    %1659 = vperm.xlu0 %1658, %v1588
    %v1660 = vpop.permute.xlu0 %1659
    %v1661 = vlaneseq
    %v1662 = vshrl.u32 %v1661, 7
    %v1663 = vadd.s32 %v1662, 96
    %1664 = vset.pattern.permute.xlu0 %v1663
    %1665 = vperm.xlu0 %1664, %v1588
    %v1666 = vpop.permute.xlu0 %1665
    %v1667 = vlaneseq
    %v1668 = vshrl.u32 %v1667, 7
    %v1669 = vadd.s32 %v1668, 104
    %1670 = vset.pattern.permute.xlu0 %v1669
    %1671 = vperm.xlu0 %1670, %v1588
    %v1672 = vpop.permute.xlu0 %1671
    %v1673 = vlaneseq
    %v1674 = vshrl.u32 %v1673, 7
    %v1675 = vadd.s32 %v1674, 112
    %1676 = vset.pattern.permute.xlu0 %v1675
    %1677 = vperm.xlu0 %1676, %v1588
    %v1678 = vpop.permute.xlu0 %1677
    %v1679 = vlaneseq
    %v1680 = vshrl.u32 %v1679, 7
    %v1681 = vadd.s32 %v1680, 120
    %1682 = vset.pattern.permute.xlu0 %v1681
    %1683 = vperm.xlu0 %1682, %v1588
    %v1684 = vpop.permute.xlu0 %1683
    %v1685 = vperm.slane %v1199, 5
    %v1686 = vlaneseq
    %v1687 = vshrl.u32 %v1686, 7
    %1689 = vset.pattern.permute.xlu0 %v1687
    %1690 = vperm.xlu0 %1689, %v1685
    %v1691 = vpop.permute.xlu0 %1690
    %v1692 = vlaneseq
    %v1693 = vshrl.u32 %v1692, 7
    %v1694 = vadd.s32 %v1693, 8
    %1695 = vset.pattern.permute.xlu0 %v1694
    %1696 = vperm.xlu0 %1695, %v1685
    %v1697 = vpop.permute.xlu0 %1696
    %v1698 = vlaneseq
    %v1699 = vshrl.u32 %v1698, 7
    %v1700 = vadd.s32 %v1699, 16
    %1701 = vset.pattern.permute.xlu0 %v1700
    %1702 = vperm.xlu0 %1701, %v1685
    %v1703 = vpop.permute.xlu0 %1702
    %v1704 = vlaneseq
    %v1705 = vshrl.u32 %v1704, 7
    %v1706 = vadd.s32 %v1705, 24
    %1707 = vset.pattern.permute.xlu0 %v1706
    %1708 = vperm.xlu0 %1707, %v1685
    %v1709 = vpop.permute.xlu0 %1708
    %v1710 = vlaneseq
    %v1711 = vshrl.u32 %v1710, 7
    %v1712 = vadd.s32 %v1711, 32
    %1713 = vset.pattern.permute.xlu0 %v1712
    %1714 = vperm.xlu0 %1713, %v1685
    %v1715 = vpop.permute.xlu0 %1714
    %v1716 = vlaneseq
    %v1717 = vshrl.u32 %v1716, 7
    %v1718 = vadd.s32 %v1717, 40
    %1719 = vset.pattern.permute.xlu0 %v1718
    %1720 = vperm.xlu0 %1719, %v1685
    %v1721 = vpop.permute.xlu0 %1720
    %v1722 = vlaneseq
    %v1723 = vshrl.u32 %v1722, 7
    %v1724 = vadd.s32 %v1723, 48
    %1725 = vset.pattern.permute.xlu0 %v1724
    %1726 = vperm.xlu0 %1725, %v1685
    %v1727 = vpop.permute.xlu0 %1726
    %v1728 = vlaneseq
    %v1729 = vshrl.u32 %v1728, 7
    %v1730 = vadd.s32 %v1729, 56
    %1731 = vset.pattern.permute.xlu0 %v1730
    %1732 = vperm.xlu0 %1731, %v1685
    %v1733 = vpop.permute.xlu0 %1732
    %v1734 = vlaneseq
    %v1735 = vshrl.u32 %v1734, 7
    %v1736 = vadd.s32 %v1735, 64
    %1737 = vset.pattern.permute.xlu0 %v1736
    %1738 = vperm.xlu0 %1737, %v1685
    %v1739 = vpop.permute.xlu0 %1738
    %v1740 = vlaneseq
    %v1741 = vshrl.u32 %v1740, 7
    %v1742 = vadd.s32 %v1741, 72
    %1743 = vset.pattern.permute.xlu0 %v1742
    %1744 = vperm.xlu0 %1743, %v1685
    %v1745 = vpop.permute.xlu0 %1744
    %v1746 = vlaneseq
    %v1747 = vshrl.u32 %v1746, 7
    %v1748 = vadd.s32 %v1747, 80
    %1749 = vset.pattern.permute.xlu0 %v1748
    %1750 = vperm.xlu0 %1749, %v1685
    %v1751 = vpop.permute.xlu0 %1750
    %v1752 = vlaneseq
    %v1753 = vshrl.u32 %v1752, 7
    %v1754 = vadd.s32 %v1753, 88
    %1755 = vset.pattern.permute.xlu0 %v1754
    %1756 = vperm.xlu0 %1755, %v1685
    %v1757 = vpop.permute.xlu0 %1756
    %v1758 = vlaneseq
    %v1759 = vshrl.u32 %v1758, 7
    %v1760 = vadd.s32 %v1759, 96
    %1761 = vset.pattern.permute.xlu0 %v1760
    %1762 = vperm.xlu0 %1761, %v1685
    %v1763 = vpop.permute.xlu0 %1762
    %v1764 = vlaneseq
    %v1765 = vshrl.u32 %v1764, 7
    %v1766 = vadd.s32 %v1765, 104
    %1767 = vset.pattern.permute.xlu0 %v1766
    %1768 = vperm.xlu0 %1767, %v1685
    %v1769 = vpop.permute.xlu0 %1768
    %v1770 = vlaneseq
    %v1771 = vshrl.u32 %v1770, 7
    %v1772 = vadd.s32 %v1771, 112
    %1773 = vset.pattern.permute.xlu0 %v1772
    %1774 = vperm.xlu0 %1773, %v1685
    %v1775 = vpop.permute.xlu0 %1774
    %v1776 = vlaneseq
    %v1777 = vshrl.u32 %v1776, 7
    %v1778 = vadd.s32 %v1777, 120
    %1779 = vset.pattern.permute.xlu0 %v1778
    %1780 = vperm.xlu0 %1779, %v1685
    %v1781 = vpop.permute.xlu0 %1780
    %v1782 = vperm.slane %v1199, 6
    %v1783 = vlaneseq
    %v1784 = vshrl.u32 %v1783, 7
    %1786 = vset.pattern.permute.xlu0 %v1784
    %1787 = vperm.xlu0 %1786, %v1782
    %v1788 = vpop.permute.xlu0 %1787
    %v1789 = vlaneseq
    %v1790 = vshrl.u32 %v1789, 7
    %v1791 = vadd.s32 %v1790, 8
    %1792 = vset.pattern.permute.xlu0 %v1791
    %1793 = vperm.xlu0 %1792, %v1782
    %v1794 = vpop.permute.xlu0 %1793
    %v1795 = vlaneseq
    %v1796 = vshrl.u32 %v1795, 7
    %v1797 = vadd.s32 %v1796, 16
    %1798 = vset.pattern.permute.xlu0 %v1797
    %1799 = vperm.xlu0 %1798, %v1782
    %v1800 = vpop.permute.xlu0 %1799
    %v1801 = vlaneseq
    %v1802 = vshrl.u32 %v1801, 7
    %v1803 = vadd.s32 %v1802, 24
    %1804 = vset.pattern.permute.xlu0 %v1803
    %1805 = vperm.xlu0 %1804, %v1782
    %v1806 = vpop.permute.xlu0 %1805
    %v1807 = vlaneseq
    %v1808 = vshrl.u32 %v1807, 7
    %v1809 = vadd.s32 %v1808, 32
    %1810 = vset.pattern.permute.xlu0 %v1809
    %1811 = vperm.xlu0 %1810, %v1782
    %v1812 = vpop.permute.xlu0 %1811
    %v1813 = vlaneseq
    %v1814 = vshrl.u32 %v1813, 7
    %v1815 = vadd.s32 %v1814, 40
    %1816 = vset.pattern.permute.xlu0 %v1815
    %1817 = vperm.xlu0 %1816, %v1782
    %v1818 = vpop.permute.xlu0 %1817
    %v1819 = vlaneseq
    %v1820 = vshrl.u32 %v1819, 7
    %v1821 = vadd.s32 %v1820, 48
    %1822 = vset.pattern.permute.xlu0 %v1821
    %1823 = vperm.xlu0 %1822, %v1782
    %v1824 = vpop.permute.xlu0 %1823
    %v1825 = vlaneseq
    %v1826 = vshrl.u32 %v1825, 7
    %v1827 = vadd.s32 %v1826, 56
    %1828 = vset.pattern.permute.xlu0 %v1827
    %1829 = vperm.xlu0 %1828, %v1782
    %v1830 = vpop.permute.xlu0 %1829
    %v1831 = vlaneseq
    %v1832 = vshrl.u32 %v1831, 7
    %v1833 = vadd.s32 %v1832, 64
    %1834 = vset.pattern.permute.xlu0 %v1833
    %1835 = vperm.xlu0 %1834, %v1782
    %v1836 = vpop.permute.xlu0 %1835
    %v1837 = vlaneseq
    %v1838 = vshrl.u32 %v1837, 7
    %v1839 = vadd.s32 %v1838, 72
    %1840 = vset.pattern.permute.xlu0 %v1839
    %1841 = vperm.xlu0 %1840, %v1782
    %v1842 = vpop.permute.xlu0 %1841
    %v1843 = vlaneseq
    %v1844 = vshrl.u32 %v1843, 7
    %v1845 = vadd.s32 %v1844, 80
    %1846 = vset.pattern.permute.xlu0 %v1845
    %1847 = vperm.xlu0 %1846, %v1782
    %v1848 = vpop.permute.xlu0 %1847
    %v1849 = vlaneseq
    %v1850 = vshrl.u32 %v1849, 7
    %v1851 = vadd.s32 %v1850, 88
    %1852 = vset.pattern.permute.xlu0 %v1851
    %1853 = vperm.xlu0 %1852, %v1782
    %v1854 = vpop.permute.xlu0 %1853
    %v1855 = vlaneseq
    %v1856 = vshrl.u32 %v1855, 7
    %v1857 = vadd.s32 %v1856, 96
    %1858 = vset.pattern.permute.xlu0 %v1857
    %1859 = vperm.xlu0 %1858, %v1782
    %v1860 = vpop.permute.xlu0 %1859
    %v1861 = vlaneseq
    %v1862 = vshrl.u32 %v1861, 7
    %v1863 = vadd.s32 %v1862, 104
    %1864 = vset.pattern.permute.xlu0 %v1863
    %1865 = vperm.xlu0 %1864, %v1782
    %v1866 = vpop.permute.xlu0 %1865
    %v1867 = vlaneseq
    %v1868 = vshrl.u32 %v1867, 7
    %v1869 = vadd.s32 %v1868, 112
    %1870 = vset.pattern.permute.xlu0 %v1869
    %1871 = vperm.xlu0 %1870, %v1782
    %v1872 = vpop.permute.xlu0 %1871
    %v1873 = vlaneseq
    %v1874 = vshrl.u32 %v1873, 7
    %v1875 = vadd.s32 %v1874, 120
    %1876 = vset.pattern.permute.xlu0 %v1875
    %1877 = vperm.xlu0 %1876, %v1782
    %v1878 = vpop.permute.xlu0 %1877
    %v1879 = vperm.slane %v1199, 7
    %v1880 = vlaneseq
    %v1881 = vshrl.u32 %v1880, 7
    %1883 = vset.pattern.permute.xlu0 %v1881
    %1884 = vperm.xlu0 %1883, %v1879
    %v1885 = vpop.permute.xlu0 %1884
    %v1886 = vlaneseq
    %v1887 = vshrl.u32 %v1886, 7
    %v1888 = vadd.s32 %v1887, 8
    %1889 = vset.pattern.permute.xlu0 %v1888
    %1890 = vperm.xlu0 %1889, %v1879
    %v1891 = vpop.permute.xlu0 %1890
    %v1892 = vlaneseq
    %v1893 = vshrl.u32 %v1892, 7
    %v1894 = vadd.s32 %v1893, 16
    %1895 = vset.pattern.permute.xlu0 %v1894
    %1896 = vperm.xlu0 %1895, %v1879
    %v1897 = vpop.permute.xlu0 %1896
    %v1898 = vlaneseq
    %v1899 = vshrl.u32 %v1898, 7
    %v1900 = vadd.s32 %v1899, 24
    %1901 = vset.pattern.permute.xlu0 %v1900
    %1902 = vperm.xlu0 %1901, %v1879
    %v1903 = vpop.permute.xlu0 %1902
    %v1904 = vlaneseq
    %v1905 = vshrl.u32 %v1904, 7
    %v1906 = vadd.s32 %v1905, 32
    %1907 = vset.pattern.permute.xlu0 %v1906
    %1908 = vperm.xlu0 %1907, %v1879
    %v1909 = vpop.permute.xlu0 %1908
    %v1910 = vlaneseq
    %v1911 = vshrl.u32 %v1910, 7
    %v1912 = vadd.s32 %v1911, 40
    %1913 = vset.pattern.permute.xlu0 %v1912
    %1914 = vperm.xlu0 %1913, %v1879
    %v1915 = vpop.permute.xlu0 %1914
    %v1916 = vlaneseq
    %v1917 = vshrl.u32 %v1916, 7
    %v1918 = vadd.s32 %v1917, 48
    %1919 = vset.pattern.permute.xlu0 %v1918
    %1920 = vperm.xlu0 %1919, %v1879
    %v1921 = vpop.permute.xlu0 %1920
    %v1922 = vlaneseq
    %v1923 = vshrl.u32 %v1922, 7
    %v1924 = vadd.s32 %v1923, 56
    %1925 = vset.pattern.permute.xlu0 %v1924
    %1926 = vperm.xlu0 %1925, %v1879
    %v1927 = vpop.permute.xlu0 %1926
    %v1928 = vlaneseq
    %v1929 = vshrl.u32 %v1928, 7
    %v1930 = vadd.s32 %v1929, 64
    %1931 = vset.pattern.permute.xlu0 %v1930
    %1932 = vperm.xlu0 %1931, %v1879
    %v1933 = vpop.permute.xlu0 %1932
    %v1934 = vlaneseq
    %v1935 = vshrl.u32 %v1934, 7
    %v1936 = vadd.s32 %v1935, 72
    %1937 = vset.pattern.permute.xlu0 %v1936
    %1938 = vperm.xlu0 %1937, %v1879
    %v1939 = vpop.permute.xlu0 %1938
    %v1940 = vlaneseq
    %v1941 = vshrl.u32 %v1940, 7
    %v1942 = vadd.s32 %v1941, 80
    %1943 = vset.pattern.permute.xlu0 %v1942
    %1944 = vperm.xlu0 %1943, %v1879
    %v1945 = vpop.permute.xlu0 %1944
    %v1946 = vlaneseq
    %v1947 = vshrl.u32 %v1946, 7
    %v1948 = vadd.s32 %v1947, 88
    %1949 = vset.pattern.permute.xlu0 %v1948
    %1950 = vperm.xlu0 %1949, %v1879
    %v1951 = vpop.permute.xlu0 %1950
    %v1952 = vlaneseq
    %v1953 = vshrl.u32 %v1952, 7
    %v1954 = vadd.s32 %v1953, 96
    %1955 = vset.pattern.permute.xlu0 %v1954
    %1956 = vperm.xlu0 %1955, %v1879
    %v1957 = vpop.permute.xlu0 %1956
    %v1958 = vlaneseq
    %v1959 = vshrl.u32 %v1958, 7
    %v1960 = vadd.s32 %v1959, 104
    %1961 = vset.pattern.permute.xlu0 %v1960
    %1962 = vperm.xlu0 %1961, %v1879
    %v1963 = vpop.permute.xlu0 %1962
    %v1964 = vlaneseq
    %v1965 = vshrl.u32 %v1964, 7
    %v1966 = vadd.s32 %v1965, 112
    %1967 = vset.pattern.permute.xlu0 %v1966
    %1968 = vperm.xlu0 %1967, %v1879
    %v1969 = vpop.permute.xlu0 %1968
    %v1970 = vlaneseq
    %v1971 = vshrl.u32 %v1970, 7
    %v1972 = vadd.s32 %v1971, 120
    %1973 = vset.pattern.permute.xlu0 %v1972
    %1974 = vperm.xlu0 %1973, %v1879
    %v1975 = vpop.permute.xlu0 %1974
    %v1976 = vmul.f32 %v1206, %v54
    %v1977 = vmul.f32 %v1212, %v55
    %v1978 = vmul.f32 %v1218, %v56
    %v1979 = vmul.f32 %v1224, %v57
    %v1980 = vmul.f32 %v1230, %v58
    %v1981 = vmul.f32 %v1236, %v59
    %v1982 = vmul.f32 %v1242, %v60
    %v1983 = vmul.f32 %v1248, %v61
    %v1984 = vmul.f32 %v1254, %v62
    %v1985 = vmul.f32 %v1260, %v63
    %v1986 = vmul.f32 %v1266, %v64
    %v1987 = vmul.f32 %v1272, %v65
    %v1988 = vmul.f32 %v1278, %v66
    %v1989 = vmul.f32 %v1284, %v67
    %v1990 = vmul.f32 %v1290, %v68
    %v1991 = vmul.f32 %v1296, %v69
    %v1992 = vmul.f32 %v1303, %v70
    %v1993 = vmul.f32 %v1309, %v71
    %v1994 = vmul.f32 %v1315, %v72
    %v1995 = vmul.f32 %v1321, %v73
    %v1996 = vmul.f32 %v1327, %v74
    %v1997 = vmul.f32 %v1333, %v75
    %v1998 = vmul.f32 %v1339, %v76
    %v1999 = vmul.f32 %v1345, %v77
    %v2000 = vmul.f32 %v1351, %v78
    %v2001 = vmul.f32 %v1357, %v79
    %v2002 = vmul.f32 %v1363, %v80
    %v2003 = vmul.f32 %v1369, %v81
    %v2004 = vmul.f32 %v1375, %v82
    %v2005 = vmul.f32 %v1381, %v83
    %v2006 = vmul.f32 %v1387, %v84
    %v2007 = vmul.f32 %v1393, %v85
    %v2008 = vmul.f32 %v1400, %v86
    %v2009 = vmul.f32 %v1406, %v87
    %v2010 = vmul.f32 %v1412, %v88
    %v2011 = vmul.f32 %v1418, %v89
    %v2012 = vmul.f32 %v1424, %v90
    %v2013 = vmul.f32 %v1430, %v91
    %v2014 = vmul.f32 %v1436, %v92
    %v2015 = vmul.f32 %v1442, %v93
    %v2016 = vmul.f32 %v1448, %v94
    %v2017 = vmul.f32 %v1454, %v95
    %v2018 = vmul.f32 %v1460, %v96
    %v2019 = vmul.f32 %v1466, %v97
    %v2020 = vmul.f32 %v1472, %v98
    %v2021 = vmul.f32 %v1478, %v99
    %v2022 = vmul.f32 %v1484, %v100
    %v2023 = vmul.f32 %v1490, %v101
    %v2024 = vmul.f32 %v1497, %v102
    %v2025 = vmul.f32 %v1503, %v103
    %v2026 = vmul.f32 %v1509, %v104
    %v2027 = vmul.f32 %v1515, %v105
    %v2028 = vmul.f32 %v1521, %v106
    %v2029 = vmul.f32 %v1527, %v107
    %v2030 = vmul.f32 %v1533, %v108
    %v2031 = vmul.f32 %v1539, %v109
    %v2032 = vmul.f32 %v1545, %v110
    %v2033 = vmul.f32 %v1551, %v111
    %v2034 = vmul.f32 %v1557, %v112
    %v2035 = vmul.f32 %v1563, %v113
    %v2036 = vmul.f32 %v1569, %v114
    %v2037 = vmul.f32 %v1575, %v115
    %v2038 = vmul.f32 %v1581, %v116
    %v2039 = vmul.f32 %v1587, %v117
    %v2040 = vmul.f32 %v1594, %v118
    %v2041 = vmul.f32 %v1600, %v119
    %v2042 = vmul.f32 %v1606, %v120
    %v2043 = vmul.f32 %v1612, %v121
    %v2044 = vmul.f32 %v1618, %v122
    %v2045 = vmul.f32 %v1624, %v123
    %v2046 = vmul.f32 %v1630, %v124
    %v2047 = vmul.f32 %v1636, %v125
    %v2048 = vmul.f32 %v1642, %v126
    %v2049 = vmul.f32 %v1648, %v127
    %v2050 = vmul.f32 %v1654, %v128
    %v2051 = vmul.f32 %v1660, %v129
    %v2052 = vmul.f32 %v1666, %v130
    %v2053 = vmul.f32 %v1672, %v131
    %v2054 = vmul.f32 %v1678, %v132
    %v2055 = vmul.f32 %v1684, %v133
    %v2056 = vmul.f32 %v1691, %v134
    %v2057 = vmul.f32 %v1697, %v135
    %v2058 = vmul.f32 %v1703, %v136
    %v2059 = vmul.f32 %v1709, %v137
    %v2060 = vmul.f32 %v1715, %v138
    %v2061 = vmul.f32 %v1721, %v139
    %v2062 = vmul.f32 %v1727, %v140
    %v2063 = vmul.f32 %v1733, %v141
    %v2064 = vmul.f32 %v1739, %v142
    %v2065 = vmul.f32 %v1745, %v143
    %v2066 = vmul.f32 %v1751, %v144
    %v2067 = vmul.f32 %v1757, %v145
    %v2068 = vmul.f32 %v1763, %v146
    %v2069 = vmul.f32 %v1769, %v147
    %v2070 = vmul.f32 %v1775, %v148
    %v2071 = vmul.f32 %v1781, %v149
    %v2072 = vmul.f32 %v1788, %v150
    %v2073 = vmul.f32 %v1794, %v151
    %v2074 = vmul.f32 %v1800, %v152
    %v2075 = vmul.f32 %v1806, %v153
    %v2076 = vmul.f32 %v1812, %v154
    %v2077 = vmul.f32 %v1818, %v155
    %v2078 = vmul.f32 %v1824, %v156
    %v2079 = vmul.f32 %v1830, %v157
    %v2080 = vmul.f32 %v1836, %v158
    %v2081 = vmul.f32 %v1842, %v159
    %v2082 = vmul.f32 %v1848, %v160
    %v2083 = vmul.f32 %v1854, %v161
    %v2084 = vmul.f32 %v1860, %v162
    %v2085 = vmul.f32 %v1866, %v163
    %v2086 = vmul.f32 %v1872, %v164
    %v2087 = vmul.f32 %v1878, %v165
    %v2088 = vmul.f32 %v1885, %v166
    %v2089 = vmul.f32 %v1891, %v167
    %v2090 = vmul.f32 %v1897, %v168
    %v2091 = vmul.f32 %v1903, %v169
    %v2092 = vmul.f32 %v1909, %v170
    %v2093 = vmul.f32 %v1915, %v171
    %v2094 = vmul.f32 %v1921, %v172
    %v2095 = vmul.f32 %v1927, %v173
    %v2096 = vmul.f32 %v1933, %v174
    %v2097 = vmul.f32 %v1939, %v175
    %v2098 = vmul.f32 %v1945, %v176
    %v2099 = vmul.f32 %v1951, %v177
    %v2100 = vmul.f32 %v1957, %v178
    %v2101 = vmul.f32 %v1963, %v179
    %v2102 = vmul.f32 %v1969, %v180
    %v2103 = vmul.f32 %v1975, %v181
    %v2104 = vsel %vm192, %v1976, 0.0
    %v2105 = vsel %vm192, %v1977, 0.0
    %v2106 = vadd.f32 %v2104, %v2105
    %v2107 = vsel %vm192, %v1978, 0.0
    %v2108 = vadd.f32 %v2106, %v2107
    %v2109 = vsel %vm192, %v1979, 0.0
    %v2110 = vadd.f32 %v2108, %v2109
    %v2111 = vsel %vm192, %v1980, 0.0
    %v2112 = vadd.f32 %v2110, %v2111
    %v2113 = vsel %vm192, %v1981, 0.0
    %v2114 = vadd.f32 %v2112, %v2113
    %v2115 = vsel %vm192, %v1982, 0.0
    %v2116 = vadd.f32 %v2114, %v2115
    %v2117 = vsel %vm192, %v1983, 0.0
    %v2118 = vadd.f32 %v2116, %v2117
    %v2119 = vsel %vm192, %v1984, 0.0
    %v2120 = vadd.f32 %v2118, %v2119
    %v2121 = vsel %vm192, %v1985, 0.0
    %v2122 = vadd.f32 %v2120, %v2121
    %v2123 = vsel %vm192, %v1986, 0.0
    %v2124 = vadd.f32 %v2122, %v2123
    %v2125 = vsel %vm192, %v1987, 0.0
    %v2126 = vadd.f32 %v2124, %v2125
    %v2127 = vsel %vm192, %v1988, 0.0
    %v2128 = vadd.f32 %v2126, %v2127
    %v2129 = vsel %vm192, %v1989, 0.0
    %v2130 = vadd.f32 %v2128, %v2129
    %v2131 = vsel %vm192, %v1990, 0.0
    %v2132 = vadd.f32 %v2130, %v2131
    %v2133 = vsel %vm192, %v1991, 0.0
    %v2134 = vadd.f32 %v2132, %v2133
    %v2135 = vrot.slane %v2134, 4
    %v2136 = vadd.f32 %v2134, %v2135
    %v2137 = vrot.slane %v2136, 2
    %v2138 = vadd.f32 %v2136, %v2137
    %v2139 = vrot.slane %v2138, 1
    %v2140 = vadd.f32 %v2138, %v2139
    %v2141 = vsel %vm192, %v1992, 0.0
    %v2142 = vsel %vm192, %v1993, 0.0
    %v2143 = vadd.f32 %v2141, %v2142
    %v2144 = vsel %vm192, %v1994, 0.0
    %v2145 = vadd.f32 %v2143, %v2144
    %v2146 = vsel %vm192, %v1995, 0.0
    %v2147 = vadd.f32 %v2145, %v2146
    %v2148 = vsel %vm192, %v1996, 0.0
    %v2149 = vadd.f32 %v2147, %v2148
    %v2150 = vsel %vm192, %v1997, 0.0
    %v2151 = vadd.f32 %v2149, %v2150
    %v2152 = vsel %vm192, %v1998, 0.0
    %v2153 = vadd.f32 %v2151, %v2152
    %v2154 = vsel %vm192, %v1999, 0.0
    %v2155 = vadd.f32 %v2153, %v2154
    %v2156 = vsel %vm192, %v2000, 0.0
    %v2157 = vadd.f32 %v2155, %v2156
    %v2158 = vsel %vm192, %v2001, 0.0
    %v2159 = vadd.f32 %v2157, %v2158
    %v2160 = vsel %vm192, %v2002, 0.0
    %v2161 = vadd.f32 %v2159, %v2160
    %v2162 = vsel %vm192, %v2003, 0.0
    %v2163 = vadd.f32 %v2161, %v2162
    %v2164 = vsel %vm192, %v2004, 0.0
    %v2165 = vadd.f32 %v2163, %v2164
    %v2166 = vsel %vm192, %v2005, 0.0
    %v2167 = vadd.f32 %v2165, %v2166
    %v2168 = vsel %vm192, %v2006, 0.0
    %v2169 = vadd.f32 %v2167, %v2168
    %v2170 = vsel %vm192, %v2007, 0.0
    %v2171 = vadd.f32 %v2169, %v2170
    %v2172 = vrot.slane %v2171, 4
    %v2173 = vadd.f32 %v2171, %v2172
    %v2174 = vrot.slane %v2173, 2
    %v2175 = vadd.f32 %v2173, %v2174
    %v2176 = vrot.slane %v2175, 1
    %v2177 = vadd.f32 %v2175, %v2176
    %v2178 = vsel %vm192, %v2008, 0.0
    %v2179 = vsel %vm192, %v2009, 0.0
    %v2180 = vadd.f32 %v2178, %v2179
    %v2181 = vsel %vm192, %v2010, 0.0
    %v2182 = vadd.f32 %v2180, %v2181
    %v2183 = vsel %vm192, %v2011, 0.0
    %v2184 = vadd.f32 %v2182, %v2183
    %v2185 = vsel %vm192, %v2012, 0.0
    %v2186 = vadd.f32 %v2184, %v2185
    %v2187 = vsel %vm192, %v2013, 0.0
    %v2188 = vadd.f32 %v2186, %v2187
    %v2189 = vsel %vm192, %v2014, 0.0
    %v2190 = vadd.f32 %v2188, %v2189
    %v2191 = vsel %vm192, %v2015, 0.0
    %v2192 = vadd.f32 %v2190, %v2191
    %v2193 = vsel %vm192, %v2016, 0.0
    %v2194 = vadd.f32 %v2192, %v2193
    %v2195 = vsel %vm192, %v2017, 0.0
    %v2196 = vadd.f32 %v2194, %v2195
    %v2197 = vsel %vm192, %v2018, 0.0
    %v2198 = vadd.f32 %v2196, %v2197
    %v2199 = vsel %vm192, %v2019, 0.0
    %v2200 = vadd.f32 %v2198, %v2199
    %v2201 = vsel %vm192, %v2020, 0.0
    %v2202 = vadd.f32 %v2200, %v2201
    %v2203 = vsel %vm192, %v2021, 0.0
    %v2204 = vadd.f32 %v2202, %v2203
    %v2205 = vsel %vm192, %v2022, 0.0
    %v2206 = vadd.f32 %v2204, %v2205
    %v2207 = vsel %vm192, %v2023, 0.0
    %v2208 = vadd.f32 %v2206, %v2207
    %v2209 = vrot.slane %v2208, 4
    %v2210 = vadd.f32 %v2208, %v2209
    %v2211 = vrot.slane %v2210, 2
    %v2212 = vadd.f32 %v2210, %v2211
    %v2213 = vrot.slane %v2212, 1
    %v2214 = vadd.f32 %v2212, %v2213
    %v2215 = vsel %vm192, %v2024, 0.0
    %v2216 = vsel %vm192, %v2025, 0.0
    %v2217 = vadd.f32 %v2215, %v2216
    %v2218 = vsel %vm192, %v2026, 0.0
    %v2219 = vadd.f32 %v2217, %v2218
    %v2220 = vsel %vm192, %v2027, 0.0
    %v2221 = vadd.f32 %v2219, %v2220
    %v2222 = vsel %vm192, %v2028, 0.0
    %v2223 = vadd.f32 %v2221, %v2222
    %v2224 = vsel %vm192, %v2029, 0.0
    %v2225 = vadd.f32 %v2223, %v2224
    %v2226 = vsel %vm192, %v2030, 0.0
    %v2227 = vadd.f32 %v2225, %v2226
    %v2228 = vsel %vm192, %v2031, 0.0
    %v2229 = vadd.f32 %v2227, %v2228
    %v2230 = vsel %vm192, %v2032, 0.0
    %v2231 = vadd.f32 %v2229, %v2230
    %v2232 = vsel %vm192, %v2033, 0.0
    %v2233 = vadd.f32 %v2231, %v2232
    %v2234 = vsel %vm192, %v2034, 0.0
    %v2235 = vadd.f32 %v2233, %v2234
    %v2236 = vsel %vm192, %v2035, 0.0
    %v2237 = vadd.f32 %v2235, %v2236
    %v2238 = vsel %vm192, %v2036, 0.0
    %v2239 = vadd.f32 %v2237, %v2238
    %v2240 = vsel %vm192, %v2037, 0.0
    %v2241 = vadd.f32 %v2239, %v2240
    %v2242 = vsel %vm192, %v2038, 0.0
    %v2243 = vadd.f32 %v2241, %v2242
    %v2244 = vsel %vm192, %v2039, 0.0
    %v2245 = vadd.f32 %v2243, %v2244
    %v2246 = vrot.slane %v2245, 4
    %v2247 = vadd.f32 %v2245, %v2246
    %v2248 = vrot.slane %v2247, 2
    %v2249 = vadd.f32 %v2247, %v2248
    %v2250 = vrot.slane %v2249, 1
    %v2251 = vadd.f32 %v2249, %v2250
    %v2252 = vsel %vm192, %v2040, 0.0
    %v2253 = vsel %vm192, %v2041, 0.0
    %v2254 = vadd.f32 %v2252, %v2253
    %v2255 = vsel %vm192, %v2042, 0.0
    %v2256 = vadd.f32 %v2254, %v2255
    %v2257 = vsel %vm192, %v2043, 0.0
    %v2258 = vadd.f32 %v2256, %v2257
    %v2259 = vsel %vm192, %v2044, 0.0
    %v2260 = vadd.f32 %v2258, %v2259
    %v2261 = vsel %vm192, %v2045, 0.0
    %v2262 = vadd.f32 %v2260, %v2261
    %v2263 = vsel %vm192, %v2046, 0.0
    %v2264 = vadd.f32 %v2262, %v2263
    %v2265 = vsel %vm192, %v2047, 0.0
    %v2266 = vadd.f32 %v2264, %v2265
    %v2267 = vsel %vm192, %v2048, 0.0
    %v2268 = vadd.f32 %v2266, %v2267
    %v2269 = vsel %vm192, %v2049, 0.0
    %v2270 = vadd.f32 %v2268, %v2269
    %v2271 = vsel %vm192, %v2050, 0.0
    %v2272 = vadd.f32 %v2270, %v2271
    %v2273 = vsel %vm192, %v2051, 0.0
    %v2274 = vadd.f32 %v2272, %v2273
    %v2275 = vsel %vm192, %v2052, 0.0
    %v2276 = vadd.f32 %v2274, %v2275
    %v2277 = vsel %vm192, %v2053, 0.0
    %v2278 = vadd.f32 %v2276, %v2277
    %v2279 = vsel %vm192, %v2054, 0.0
    %v2280 = vadd.f32 %v2278, %v2279
    %v2281 = vsel %vm192, %v2055, 0.0
    %v2282 = vadd.f32 %v2280, %v2281
    %v2283 = vrot.slane %v2282, 4
    %v2284 = vadd.f32 %v2282, %v2283
    %v2285 = vrot.slane %v2284, 2
    %v2286 = vadd.f32 %v2284, %v2285
    %v2287 = vrot.slane %v2286, 1
    %v2288 = vadd.f32 %v2286, %v2287
    %v2289 = vsel %vm192, %v2056, 0.0
    %v2290 = vsel %vm192, %v2057, 0.0
    %v2291 = vadd.f32 %v2289, %v2290
    %v2292 = vsel %vm192, %v2058, 0.0
    %v2293 = vadd.f32 %v2291, %v2292
    %v2294 = vsel %vm192, %v2059, 0.0
    %v2295 = vadd.f32 %v2293, %v2294
    %v2296 = vsel %vm192, %v2060, 0.0
    %v2297 = vadd.f32 %v2295, %v2296
    %v2298 = vsel %vm192, %v2061, 0.0
    %v2299 = vadd.f32 %v2297, %v2298
    %v2300 = vsel %vm192, %v2062, 0.0
    %v2301 = vadd.f32 %v2299, %v2300
    %v2302 = vsel %vm192, %v2063, 0.0
    %v2303 = vadd.f32 %v2301, %v2302
    %v2304 = vsel %vm192, %v2064, 0.0
    %v2305 = vadd.f32 %v2303, %v2304
    %v2306 = vsel %vm192, %v2065, 0.0
    %v2307 = vadd.f32 %v2305, %v2306
    %v2308 = vsel %vm192, %v2066, 0.0
    %v2309 = vadd.f32 %v2307, %v2308
    %v2310 = vsel %vm192, %v2067, 0.0
    %v2311 = vadd.f32 %v2309, %v2310
    %v2312 = vsel %vm192, %v2068, 0.0
    %v2313 = vadd.f32 %v2311, %v2312
    %v2314 = vsel %vm192, %v2069, 0.0
    %v2315 = vadd.f32 %v2313, %v2314
    %v2316 = vsel %vm192, %v2070, 0.0
    %v2317 = vadd.f32 %v2315, %v2316
    %v2318 = vsel %vm192, %v2071, 0.0
    %v2319 = vadd.f32 %v2317, %v2318
    %v2320 = vrot.slane %v2319, 4
    %v2321 = vadd.f32 %v2319, %v2320
    %v2322 = vrot.slane %v2321, 2
    %v2323 = vadd.f32 %v2321, %v2322
    %v2324 = vrot.slane %v2323, 1
    %v2325 = vadd.f32 %v2323, %v2324
    %v2326 = vsel %vm192, %v2072, 0.0
    %v2327 = vsel %vm192, %v2073, 0.0
    %v2328 = vadd.f32 %v2326, %v2327
    %v2329 = vsel %vm192, %v2074, 0.0
    %v2330 = vadd.f32 %v2328, %v2329
    %v2331 = vsel %vm192, %v2075, 0.0
    %v2332 = vadd.f32 %v2330, %v2331
    %v2333 = vsel %vm192, %v2076, 0.0
    %v2334 = vadd.f32 %v2332, %v2333
    %v2335 = vsel %vm192, %v2077, 0.0
    %v2336 = vadd.f32 %v2334, %v2335
    %v2337 = vsel %vm192, %v2078, 0.0
    %v2338 = vadd.f32 %v2336, %v2337
    %v2339 = vsel %vm192, %v2079, 0.0
    %v2340 = vadd.f32 %v2338, %v2339
    %v2341 = vsel %vm192, %v2080, 0.0
    %v2342 = vadd.f32 %v2340, %v2341
    %v2343 = vsel %vm192, %v2081, 0.0
    %v2344 = vadd.f32 %v2342, %v2343
    %v2345 = vsel %vm192, %v2082, 0.0
    %v2346 = vadd.f32 %v2344, %v2345
    %v2347 = vsel %vm192, %v2083, 0.0
    %v2348 = vadd.f32 %v2346, %v2347
    %v2349 = vsel %vm192, %v2084, 0.0
    %v2350 = vadd.f32 %v2348, %v2349
    %v2351 = vsel %vm192, %v2085, 0.0
    %v2352 = vadd.f32 %v2350, %v2351
    %v2353 = vsel %vm192, %v2086, 0.0
    %v2354 = vadd.f32 %v2352, %v2353
    %v2355 = vsel %vm192, %v2087, 0.0
    %v2356 = vadd.f32 %v2354, %v2355
    %v2357 = vrot.slane %v2356, 4
    %v2358 = vadd.f32 %v2356, %v2357
    %v2359 = vrot.slane %v2358, 2
    %v2360 = vadd.f32 %v2358, %v2359
    %v2361 = vrot.slane %v2360, 1
    %v2362 = vadd.f32 %v2360, %v2361
    %v2363 = vsel %vm192, %v2088, 0.0
    %v2364 = vsel %vm192, %v2089, 0.0
    %v2365 = vadd.f32 %v2363, %v2364
    %v2366 = vsel %vm192, %v2090, 0.0
    %v2367 = vadd.f32 %v2365, %v2366
    %v2368 = vsel %vm192, %v2091, 0.0
    %v2369 = vadd.f32 %v2367, %v2368
    %v2370 = vsel %vm192, %v2092, 0.0
    %v2371 = vadd.f32 %v2369, %v2370
    %v2372 = vsel %vm192, %v2093, 0.0
    %v2373 = vadd.f32 %v2371, %v2372
    %v2374 = vsel %vm192, %v2094, 0.0
    %v2375 = vadd.f32 %v2373, %v2374
    %v2376 = vsel %vm192, %v2095, 0.0
    %v2377 = vadd.f32 %v2375, %v2376
    %v2378 = vsel %vm192, %v2096, 0.0
    %v2379 = vadd.f32 %v2377, %v2378
    %v2380 = vsel %vm192, %v2097, 0.0
    %v2381 = vadd.f32 %v2379, %v2380
    %v2382 = vsel %vm192, %v2098, 0.0
    %v2383 = vadd.f32 %v2381, %v2382
    %v2384 = vsel %vm192, %v2099, 0.0
    %v2385 = vadd.f32 %v2383, %v2384
    %v2386 = vsel %vm192, %v2100, 0.0
    %v2387 = vadd.f32 %v2385, %v2386
    %v2388 = vsel %vm192, %v2101, 0.0
    %v2389 = vadd.f32 %v2387, %v2388
    %v2390 = vsel %vm192, %v2102, 0.0
    %v2391 = vadd.f32 %v2389, %v2390
    %v2392 = vsel %vm192, %v2103, 0.0
    %v2393 = vadd.f32 %v2391, %v2392
    %v2394 = vrot.slane %v2393, 4
    %v2395 = vadd.f32 %v2393, %v2394
    %v2396 = vrot.slane %v2395, 2
    %v2397 = vadd.f32 %v2395, %v2396
    %v2398 = vrot.slane %v2397, 1
    %v2399 = vadd.f32 %v2397, %v2398
    %v2400 = vld [vmem:[%s5] sm:$0xff]
    %v2401 = vld [vmem:[%s5 + $0x8] sm:$0xff]
    %v2402 = vld [vmem:[%s5 + $0x10] sm:$0xff]
    %v2403 = vld [vmem:[%s5 + $0x18] sm:$0xff]
    %v2404 = vld [vmem:[%s8] sm:$0xff]
    %v2405 = vld [vmem:[%s8 + $0x8] sm:$0xff]
    %v2406 = vld [vmem:[%s8 + $0x10] sm:$0xff]
    %v2407 = vld [vmem:[%s8 + $0x18] sm:$0xff]
    %2408 = vmatpush.msra.mxu0 0.0
    %2409 = vmatpush.msra.mxu0 0.0
    %2410 = vmatpush.msra.mxu0 0.0
    %2411 = vmatpush.msra.mxu0 0.0
    %2412 = vmatpush.msra.mxu0 0.0
    %2413 = vmatpush.msra.mxu0 0.0
    %2414 = vmatpush.msra.mxu0 0.0
    %2415 = vmatpush.msra.mxu0 0.0
    %2416 = vmatpush.msra.mxu0 0.0
    %2417 = vmatpush.msra.mxu0 0.0
    %2418 = vmatpush.msra.mxu0 0.0
    %2419 = vmatpush.msra.mxu0 0.0
    %2420 = vmatpush.msra.mxu0 %v2407
    %2421 = vmatpush.msra.mxu0 %v2406
    %2422 = vmatpush.msra.mxu0 %v2405
    %2423 = vmatpush.msra.mxu0 %v2404
    %2424 = vmatmul.f32.gmra.mxu0 %v194
    %v2425 = vpop.f32.mrf.mxu0
    %v2426 = vadd.f32 0.0, %v2425
    %2427 = vdwg.mxu0
    %v2436 = vsel %vm1161, %v2177, %v2140
    %v2437 = vsel %vm1163, %v2214, %v2436
    %v2438 = vsel %vm1165, %v2251, %v2437
    %v2439 = vsel %vm1167, %v2288, %v2438
    %v2440 = vsel %vm1169, %v2325, %v2439
    %v2441 = vsel %vm1171, %v2362, %v2440
    %v2442 = vsel %vm1173, %v2399, %v2441
    %v2443 = vsel %vm192, %v2442, 0
    %2445 = vmatpush.msra.mxu0 0.0
    %2446 = vmatpush.msra.mxu0 0.0
    %2447 = vmatpush.msra.mxu0 0.0
    %2448 = vmatpush.msra.mxu0 0.0
    %2449 = vmatpush.msra.mxu0 0.0
    %2450 = vmatpush.msra.mxu0 0.0
    %2451 = vmatpush.msra.mxu0 0.0
    %2452 = vmatpush.msra.mxu0 0.0
    %2453 = vmatpush.msra.mxu0 0.0
    %2454 = vmatpush.msra.mxu0 0.0
    %2455 = vmatpush.msra.mxu0 0.0
    %2456 = vmatpush.msra.mxu0 0.0
    %2457 = vmatpush.msra.mxu0 %v2403
    %2458 = vmatpush.msra.mxu0 %v2402
    %2459 = vmatpush.msra.mxu0 %v2401
    %2460 = vmatpush.msra.mxu0 %v2400
    %2461 = vmatmul.f32.gmra.mxu0 %v2443
    %v2462 = vpop.f32.mrf.mxu0
    %v2463 = vadd.f32 %v2426, %v2462
    %2464 = vdwg.mxu0
    %v2465 = vld [vmem:[%s11] sm:$0x1]
    %v2467 = vperm.slane %v2465, 0
    %v2469 = vadd.f32 %v2463, %v2467
    %v2470 = vxor.u32 %v2469, 2147483648
    %v2471 = vmul.f32 %v2470, 1.442695
    %v2472 = vpow.pop %v2471
    %v2473 = vadd.f32 %v2472, 1.0
    %v2474 = vrcp.pop %v2473
    %v2475 = vmul.f32 %v2473, %v2474
    %v2476 = vsub.f32 1.0, %v2475
    %v2477 = vmul.f32 %v2474, %v2476
    %v2478 = vadd.f32 %v2474, %v2477
    %vm2479 = vweird.f32 %v2473
    %vm2480 = vweird.f32 %v2474
    %vm2481 = vmor %vm2479, %vm2480
    %v2482 = vsel %vm2481, %v2474, %v2478
    %v2483 = vand.u32 2147483647, %v2473
    %vm2484 = vcmp.eq.f32.partialorder %v2483, 8.507059e+37
    %v2485 = vand.u32 %v2473, 2147483648
    %v2486 = vor.u32 1.1754944e-38, %v2485
    %v2487 = vsel %vm2484, %v2486, %v2482
    %v2488 = vmul.f32 1.0, %v2487
    %v2489 = vld [vmem:[%s6] sm:$0xff]
    %v2490 = vld [vmem:[%s6 + $0x8] sm:$0xff]
    %v2491 = vld [vmem:[%s6 + $0x10] sm:$0xff]
    %v2492 = vld [vmem:[%s6 + $0x18] sm:$0xff]
    %v2493 = vld [vmem:[%s9] sm:$0xff]
    %v2494 = vld [vmem:[%s9 + $0x8] sm:$0xff]
    %v2495 = vld [vmem:[%s9 + $0x10] sm:$0xff]
    %v2496 = vld [vmem:[%s9 + $0x18] sm:$0xff]
    %2497 = vmatpush.msra.mxu0 0.0
    %2498 = vmatpush.msra.mxu0 0.0
    %2499 = vmatpush.msra.mxu0 0.0
    %2500 = vmatpush.msra.mxu0 0.0
    %2501 = vmatpush.msra.mxu0 0.0
    %2502 = vmatpush.msra.mxu0 0.0
    %2503 = vmatpush.msra.mxu0 0.0
    %2504 = vmatpush.msra.mxu0 0.0
    %2505 = vmatpush.msra.mxu0 0.0
    %2506 = vmatpush.msra.mxu0 0.0
    %2507 = vmatpush.msra.mxu0 0.0
    %2508 = vmatpush.msra.mxu0 0.0
    %2509 = vmatpush.msra.mxu0 %v2496
    %2510 = vmatpush.msra.mxu0 %v2495
    %2511 = vmatpush.msra.mxu0 %v2494
    %2512 = vmatpush.msra.mxu0 %v2493
    %2513 = vmatmul.f32.gmra.mxu0 %v194
    %v2514 = vpop.f32.mrf.mxu0
    %v2515 = vadd.f32 0.0, %v2514
    %2516 = vdwg.mxu0
    %2517 = vmatpush.msra.mxu0 0.0
    %2518 = vmatpush.msra.mxu0 0.0
    %2519 = vmatpush.msra.mxu0 0.0
    %2520 = vmatpush.msra.mxu0 0.0
    %2521 = vmatpush.msra.mxu0 0.0
    %2522 = vmatpush.msra.mxu0 0.0
    %2523 = vmatpush.msra.mxu0 0.0
    %2524 = vmatpush.msra.mxu0 0.0
    %2525 = vmatpush.msra.mxu0 0.0
    %2526 = vmatpush.msra.mxu0 0.0
    %2527 = vmatpush.msra.mxu0 0.0
    %2528 = vmatpush.msra.mxu0 0.0
    %2529 = vmatpush.msra.mxu0 %v2492
    %2530 = vmatpush.msra.mxu0 %v2491
    %2531 = vmatpush.msra.mxu0 %v2490
    %2532 = vmatpush.msra.mxu0 %v2489
    %2533 = vmatmul.f32.gmra.mxu0 %v2443
    %v2534 = vpop.f32.mrf.mxu0
    %v2535 = vadd.f32 %v2515, %v2534
    %2536 = vdwg.mxu0
    %v2537 = vld [vmem:[%s12] sm:$0x1]
    %v2539 = vperm.slane %v2537, 0
    %v2541 = vadd.f32 %v2535, %v2539
    %v2542 = vxor.u32 %v2541, 2147483648
    %v2543 = vmul.f32 %v2542, 1.442695
    %v2544 = vpow.pop %v2543
    %v2545 = vadd.f32 %v2544, 1.0
    %v2546 = vrcp.pop %v2545
    %v2547 = vmul.f32 %v2545, %v2546
    %v2548 = vsub.f32 1.0, %v2547
    %v2549 = vmul.f32 %v2546, %v2548
    %v2550 = vadd.f32 %v2546, %v2549
    %vm2551 = vweird.f32 %v2545
    %vm2552 = vweird.f32 %v2546
    %vm2553 = vmor %vm2551, %vm2552
    %v2554 = vsel %vm2553, %v2546, %v2550
    %v2555 = vand.u32 2147483647, %v2545
    %vm2556 = vcmp.eq.f32.partialorder %v2555, 8.507059e+37
    %v2557 = vand.u32 %v2545, 2147483648
    %v2558 = vor.u32 1.1754944e-38, %v2557
    %v2559 = vsel %vm2556, %v2558, %v2554
    %v2560 = vmul.f32 1.0, %v2559
    %v2561 = vld [vmem:[%s7] sm:$0xff]
    %v2562 = vld [vmem:[%s7 + $0x8] sm:$0xff]
    %v2563 = vld [vmem:[%s7 + $0x10] sm:$0xff]
    %v2564 = vld [vmem:[%s7 + $0x18] sm:$0xff]
    %v2565 = vld [vmem:[%s13] sm:$0x1]
    %v2567 = vperm.slane %v2565, 0
    %2569 = vmatpush.msra.mxu0 0.0
    %2570 = vmatpush.msra.mxu0 0.0
    %2571 = vmatpush.msra.mxu0 0.0
    %2572 = vmatpush.msra.mxu0 0.0
    %2573 = vmatpush.msra.mxu0 0.0
    %2574 = vmatpush.msra.mxu0 0.0
    %2575 = vmatpush.msra.mxu0 0.0
    %2576 = vmatpush.msra.mxu0 0.0
    %2577 = vmatpush.msra.mxu0 0.0
    %2578 = vmatpush.msra.mxu0 0.0
    %2579 = vmatpush.msra.mxu0 0.0
    %2580 = vmatpush.msra.mxu0 0.0
    %2581 = vmatpush.msra.mxu0 %v2564
    %2582 = vmatpush.msra.mxu0 %v2563
    %2583 = vmatpush.msra.mxu0 %v2562
    %2584 = vmatpush.msra.mxu0 %v2561
    %2585 = vmatmul.f32.gmra.mxu0 %v2443
    %v2586 = vpop.f32.mrf.mxu0
    %v2587 = vadd.f32 %v2567, %v2586
    %2588 = vdwg.mxu0
    %v2589 = vld [vmem:[%s10] sm:$0xff]
    %v2590 = vld [vmem:[%s10 + $0x8] sm:$0xff]
    %v2591 = vld [vmem:[%s10 + $0x10] sm:$0xff]
    %v2592 = vld [vmem:[%s10 + $0x18] sm:$0xff]
    %v2593 = vld [vmem:[%s14] sm:$0x1]
    %v2595 = vperm.slane %v2593, 0
    %2597 = vmatpush.msra.mxu0 0.0
    %2598 = vmatpush.msra.mxu0 0.0
    %2599 = vmatpush.msra.mxu0 0.0
    %2600 = vmatpush.msra.mxu0 0.0
    %2601 = vmatpush.msra.mxu0 0.0
    %2602 = vmatpush.msra.mxu0 0.0
    %2603 = vmatpush.msra.mxu0 0.0
    %2604 = vmatpush.msra.mxu0 0.0
    %2605 = vmatpush.msra.mxu0 0.0
    %2606 = vmatpush.msra.mxu0 0.0
    %2607 = vmatpush.msra.mxu0 0.0
    %2608 = vmatpush.msra.mxu0 0.0
    %2609 = vmatpush.msra.mxu0 %v2592
    %2610 = vmatpush.msra.mxu0 %v2591
    %2611 = vmatpush.msra.mxu0 %v2590
    %2612 = vmatpush.msra.mxu0 %v2589
    %2613 = vmatmul.f32.gmra.mxu0 %v194
    %v2614 = vpop.f32.mrf.mxu0
    %v2615 = vadd.f32 %v2595, %v2614
    %2616 = vdwg.mxu0
    %v2617 = vmul.f32 %v2488, %v2615
    %v2618 = vadd.f32 %v2587, %v2617
    %v2619 = vtanh.pop %v2618
    %v2620 = vsub.f32 %v182, %v2619
    %v2621 = vmul.f32 %v2560, %v2620
    %v2622 = vadd.f32 %v2619, %v2621
    %2623 = vst.msk [vmem:[#allocation4] sm:$0xff] %vm192, %v2622
    // Predicated region
    $region62: #{tpu_custom_call.1} parent=1 // pred_check
      _
    $region63: #{tpu_custom_call.1} parent=1 // pred_check_branch
      %2625 = sbr.rel (0) target = $region65
    $region64: #{tpu_custom_call.1} parent=1 // pred_region
      %2627 = vsyncadd [#allocation3], 0
      %s2629 = sshll.u32 [#allocation2], 4
      %s2630 = int_to_ptr.vmem [resolvable:$true] %s2629
      %s2631 = sshll.u32 %s15, 4
      %s2632 = int_to_ptr.hbm [resolvable:$true] %s2631
      %2634 = dma.vmem_to_hbm [thread:$0]  %s2630, 128, %s2632, [#allocation3]
    $region65: #{tpu_custom_call.1} parent=1 // pred_fallthru
      _
    // Predicated region
    $region66: #{tpu_custom_call.1} parent=1 // pred_check
      _
    $region67: #{tpu_custom_call.1} parent=1 // pred_check_branch
      %2636 = sbr.rel (0) target = $region69
    $region68: #{tpu_custom_call.1} parent=1 // pred_region
      %2638 = vsyncadd [#allocation5], 0
      %s2640 = sshll.u32 [#allocation4], 4
      %s2641 = int_to_ptr.vmem [resolvable:$true] %s2640
      %s2642 = sshll.u32 %s16, 4
      %s2643 = int_to_ptr.hbm [resolvable:$true] %s2642
      %2645 = dma.vmem_to_hbm [thread:$0]  %s2641, 128, %s2643, [#allocation5]
    $region69: #{tpu_custom_call.1} parent=1 // pred_fallthru
      _
    // Predicated region
    $region70: #{tpu_custom_call.1} parent=1 // pred_check
      _
    $region71: #{tpu_custom_call.1} parent=1 // pred_check_branch
      %2647 = sbr.rel (0) target = $region73
    $region72: #{tpu_custom_call.1} parent=1 // pred_region
      %2649 = dma.done [#allocation3], 128
    $region73: #{tpu_custom_call.1} parent=1 // pred_fallthru
      _
    // Predicated region
    $region74: #{tpu_custom_call.1} parent=1 // pred_check
      _
    $region75: #{tpu_custom_call.1} parent=1 // pred_check_branch
      %2651 = sbr.rel (0) target = $region77
    $region76: #{tpu_custom_call.1} parent=1 // pred_region
      %2653 = dma.done [#allocation5], 128
    $region77: #{tpu_custom_call.1} parent=1 // pred_fallthru
      _
    %2654 = vsyncpa [#allocation3], 1
    %2655 = vsyncpa [#allocation5], 1

</llo_original>
